<compile_context>
chip_gen: v6e
topology: v6e:2x2x1
jax: 0.10.0
libtpu: 0.0.40
codegen_flags: <defaults>
</compile_context>

<pallas_src>
import functools

import jax
import jax.numpy as jnp
from jax.experimental import pallas as pl
from jax.experimental.pallas import tpu as pltpu

EPS = 1e-5


# ----------------------------- quantizers ----------------------------------
def _make_act_quant(abits):
    """DoReFa activation quantizer: identity for 32 bits, else round(clip(x,0,1)*n)/n."""
    if abits == 32:
        return lambda x: x
    n = float(2 ** abits - 1)

    def q(x):
        x = jnp.clip(x, 0.0, 1.0)
        return jnp.round(x * n) * (1.0 / n)

    return q


def _weight_quant(w, wbits):
    """DoReFa weight quantizer (glue, plain JAX on the small weight tensors)."""
    if wbits == 32:
        return w
    # TODO(synk): 1-bit DoReFa weight quantization (E * sign(w/E)) not implemented.
    n = float(2 ** wbits - 1)
    t = jnp.tanh(w)
    t = t / (2.0 * jnp.max(jnp.abs(t))) + 0.5
    return 2.0 * (jnp.round(t * n) / n) - 1.0


# ------------------------------ fused kernel ---------------------------------
def _bottleneck_kernel(abits, H, W, TH, Pp, Cp,
                       x_ref, s1_ref, b1_ref, w1_ref, b2_ref, w2_ref,
                       b3_ref, w3_ref, o_ref):
    """Per (image, row-tile):
       bn1->relu->q->conv1->bn2->relu->q->conv2(3x3)->bn3->relu->q->conv3 + residual."""
    act_q = _make_act_quant(abits)
    r = pl.program_id(1)
    n_rt = pl.num_programs(1)
    rows = (TH + 2) * W          # tile rows incl. 1-row halo (x is H-padded by 1 row each side)
    tile = TH * W

    # ---- stage 1 (bn1 -> relu -> q -> conv1 -> bn2 -> relu -> q) on TH+2 rows ----
    base = pl.multiple_of(r * tile, tile)
    x_blk = x_ref[0, pl.ds(base, rows), :]                            # (rows, Cp)
    a1 = act_q(jnp.maximum(x_blk * s1_ref[...] + b1_ref[...], 0.0))
    y1 = jnp.dot(a1.astype(jnp.bfloat16), w1_ref[...],
                 preferred_element_type=jnp.float32)
    y1 = act_q(jnp.maximum(y1 + b2_ref[...], 0.0))                    # (rows, Pp)

    # halo rows that fall outside the image are conv2's zero padding
    ridx = jax.lax.broadcasted_iota(jnp.int32, (rows, 1), 0)
    pad = ((ridx < W) & (r == 0)) | ((ridx >= (TH + 1) * W) & (r == n_rt - 1))
    y1 = jnp.where(pad, 0.0, y1).astype(jnp.bfloat16)

    # ---- stage 2: 3x3 conv (pad=1) as ONE (rows,Pp)x(Pp,9Pp) matmul, then
    # per-kx vertical-tap sums via static halo slices + 2 single-sublane rolls
    # + hoisted column masks; bn3 scale is pre-folded into the taps.
    z = jnp.dot(y1, w2_ref[...], preferred_element_type=jnp.float32)  # (rows, 9*Pp)
    grp = []
    for kx in range(3):
        g = None
        for ky in range(3):
            t = ky * 3 + kx
            s = z[ky * W:ky * W + tile, t * Pp:(t + 1) * Pp]          # lane/sublane-aligned
            g = s if g is None else g + s
        grp.append(g)
    col = jax.lax.broadcasted_iota(jnp.int32, (tile, 1), 0) % W
    conv2 = grp[1]
    conv2 = conv2 + jnp.where(col > 0, pltpu.roll(grp[0], shift=1, axis=0), 0.0)
    conv2 = conv2 + jnp.where(col < W - 1,
                              pltpu.roll(grp[2], shift=tile - 1, axis=0), 0.0)
    y2 = act_q(jnp.maximum(conv2 + b3_ref[...], 0.0)).astype(jnp.bfloat16)

    # ---- stage 3: conv3 (1x1) + identity residual ----
    resid = x_ref[0, pl.ds(pl.multiple_of(r * tile + W, W), tile), :]  # skip halo row
    o_ref[0] = jnp.dot(y2, w3_ref[...], preferred_element_type=jnp.float32) + resid


# ------------------------------ wrapper --------------------------------------
def _fold_bn(bn):
    g, b, m, v = bn
    s = g / jnp.sqrt(v + EPS)
    return s.astype(jnp.float32), (b - m * s).astype(jnp.float32)


def _rup128(c):
    return ((c + 127) // 128) * 128


def _pad_to(a, shape):
    return jnp.pad(a, [(0, t - s) for s, t in zip(a.shape, shape)])


def _row_tile(H):
    return max(d for d in range(1, min(H, 8) + 1) if H % d == 0)


def _vmem_limit_bytes():
    # ~96 MiB on v5e/v6e (128 MiB physical), ~48 MiB on v7x (64 MiB physical).
    try:
        return int(pltpu.get_tpu_info().vmem_capacity_bytes * 3 // 4)
    except Exception:
        return 64 * 1024 * 1024


def bottleneck_forward_nhwc(x_nhwc, params, stride=1, wbits=32, abits=32):
    """Fused bottleneck on NHWC activations.  Keep activations in NHWC across
    stacked blocks so the NCHW<->NHWC relayout passes are not paid per block."""
    # TODO(synk): stride>1 / downsample path not implemented (downsample=None
    #             requires stride == 1 and inplanes == 4*planes anyway).
    assert stride == 1
    N, H, W, Cin = x_nhwc.shape
    P = params["w1"].shape[0]            # planes
    Cout = params["w3"].shape[0]         # planes * 4
    assert Cout == Cin, "identity residual requires inplanes == planes*expansion"

    Cp, Pp = _rup128(Cin), _rup128(P)    # lane-dense channel dims
    TH = _row_tile(H)                    # rows per spatial tile
    n_rt = H // TH

    # fold BN, quantize weights, fold post-conv BN scales into the weights (glue)
    s1, b1 = _fold_bn(params["bn1"])
    s2, b2 = _fold_bn(params["bn2"])
    s3, b3 = _fold_bn(params["bn3"])

    # conv1: (P, Cin, 1, 1) -> (Cin, P); fold s2 into output columns; bf16 MXU operand.
    w1m = _weight_quant(params["w1"], wbits)[:, :, 0, 0].T * s2[None, :]
    w1m = _pad_to(w1m, (Cp, Pp)).astype(jnp.bfloat16)

    # conv2: (P, P, 3, 3) OIHW -> taps (ky, kx, ci, co); fold s3 into co; pad each
    # tap to (Pp, Pp) and concatenate along the output dim: (Pp, 9*Pp), t = ky*3+kx.
    w2q = jnp.transpose(_weight_quant(params["w2"], wbits), (2, 3, 1, 0))
    w2q = w2q * s3[None, None, None, :]
    w2m = jnp.concatenate([_pad_to(w2q[ky, kx], (Pp, Pp))
                           for ky in range(3) for kx in range(3)],
                          axis=1).astype(jnp.bfloat16)

    # conv3: (Cout, P, 1, 1) -> (P, Cout).
    w3m = _pad_to(_weight_quant(params["w3"], wbits)[:, :, 0, 0].T,
                  (Pp, Cp)).astype(jnp.bfloat16)

    s1p = _pad_to(s1, (Cp,)).reshape(1, Cp)
    b1p = _pad_to(b1, (Cp,)).reshape(1, Cp)
    b2p = _pad_to(b2, (Pp,)).reshape(1, Pp)
    b3p = _pad_to(b3, (Pp,)).reshape(1, Pp)

    # lane-dense channel pad (no-op at real ResNet widths) + 1-row top/bottom
    # halo pad, flattened to (N, (H+2)*W, Cp).
    x_p = jnp.pad(x_nhwc.astype(jnp.float32),
                  ((0, 0), (1, 1), (0, 0), (0, Cp - Cin))).reshape(N, (H + 2) * W, Cp)

    out = pl.pallas_call(
        functools.partial(_bottleneck_kernel, abits, H, W, TH, Pp, Cp),
        out_shape=jax.ShapeDtypeStruct((N, H * W, Cp), jnp.float32),
        grid=(N, n_rt),
        in_specs=[
            pl.BlockSpec((1, (H + 2) * W, Cp), lambda n, r: (n, 0, 0)),  # x (halo-padded)
            pl.BlockSpec((1, Cp), lambda n, r: (0, 0)),                  # s1
            pl.BlockSpec((1, Cp), lambda n, r: (0, 0)),                  # b1
            pl.BlockSpec((Cp, Pp), lambda n, r: (0, 0)),                 # w1 (s2 folded)
            pl.BlockSpec((1, Pp), lambda n, r: (0, 0)),                  # b2
            pl.BlockSpec((Pp, 9 * Pp), lambda n, r: (0, 0)),             # w2 taps (s3 folded)
            pl.BlockSpec((1, Pp), lambda n, r: (0, 0)),                  # b3
            pl.BlockSpec((Pp, Cp), lambda n, r: (0, 0)),                 # w3
        ],
        out_specs=pl.BlockSpec((1, TH * W, Cp), lambda n, r: (n, r, 0)),
        compiler_params=pltpu.CompilerParams(
            dimension_semantics=("parallel", "parallel"),
            vmem_limit_bytes=_vmem_limit_bytes()),
    )(x_p, s1p, b1p, w1m, b2p, w2m, b3p, w3m)

    return out.reshape(N, H, W, Cp)[..., :Cout]


def bottleneck_forward(x_nchw, params, stride=1, wbits=32, abits=32):
    """PyTorch-parity NCHW wrapper (pays the layout round trip; prefer the NHWC
    entry point when stacking blocks)."""
    y = bottleneck_forward_nhwc(jnp.transpose(x_nchw, (0, 2, 3, 1)), params,
                                stride=stride, wbits=wbits, abits=abits)
    return jnp.transpose(y, (0, 3, 1, 2))


# --------------------------- pure-JAX reference ------------------------------
def _ref_forward(x, params, wbits, abits):
    act_q = _make_act_quant(abits)

    def bn(h, p):
        g, b, m, v = p
        s = g / jnp.sqrt(v + EPS)
        return h * s[None, :, None, None] + (b - m * s)[None, :, None, None]

    def conv(h, w, stride=1, padding=0):
        return jax.lax.conv_general_dilated(
            h, w, window_strides=(stride, stride),
            padding=[(padding, padding)] * 2,
            dimension_numbers=("NCHW", "OIHW", "NCHW"))

    residual = x
    h = act_q(jax.nn.relu(bn(x, params["bn1"])))
    h = conv(h, _weight_quant(params["w1"], wbits))
    h = act_q(jax.nn.relu(bn(h, params["bn2"])))
    h = conv(h, _weight_quant(params["w2"], wbits), stride=1, padding=1)
    h = act_q(jax.nn.relu(bn(h, params["bn3"])))
    h = conv(h, _weight_quant(params["w3"], wbits))
    return h + residual


# ------------------------------ param init -----------------------------------
def init_params(key, inplanes, planes):
    ks = jax.random.split(key, 6)

    def bn_params(k, c):
        k1, k2, k3, k4 = jax.random.split(k, 4)
        return (jax.random.uniform(k1, (c,), minval=0.5, maxval=1.5),
                0.1 * jax.random.normal(k2, (c,)),
                0.1 * jax.random.normal(k3, (c,)),
                jax.random.uniform(k4, (c,), minval=0.5, maxval=1.5))

    def conv_w(k, cout, cin, kh, kw):
        fan = cin * kh * kw
        return jax.random.normal(k, (cout, cin, kh, kw)) * (2.0 / fan) ** 0.5

    return {
        "bn1": bn_params(ks[0], inplanes),
        "w1": conv_w(ks[1], planes, inplanes, 1, 1),
        "bn2": bn_params(ks[2], planes),
        "w2": conv_w(ks[3], planes, planes, 3, 3),
        "bn3": bn_params(ks[4], planes),
        "w3": conv_w(ks[5], planes * 4, planes, 1, 1),
    }


# --------------------------------- main ---------------------------------------
if __name__ == "__main__":
    N, inplanes, planes, H, W = 2, 16, 4, 16, 16   # inplanes == planes*expansion
    key = jax.random.PRNGKey(0)
    kx, kp = jax.random.split(key)
    x = jax.random.normal(kx, (N, inplanes, H, W), dtype=jnp.float32)
    params = init_params(kp, inplanes, planes)

    # fp32 config (module defaults): check against pure-JAX reference.
    # Tolerance reflects bf16 MXU operands with f32 accumulation in the kernel
    # (the fp32 reference conv is itself not bit-exact fp32 on TPU).
    out = jax.block_until_ready(bottleneck_forward(x, params, stride=1, wbits=32, abits=32))
    ref = _ref_forward(x, params, 32, 32)
    assert out.shape == (N, planes * 4, H, W)
    assert bool(jnp.allclose(out, ref, atol=5e-2, rtol=5e-2)), \
        float(jnp.max(jnp.abs(out - ref)))

    # quantized DoReFa config (4-bit weights/activations): run & sanity-check.
    out_q = jax.block_until_ready(bottleneck_forward(x, params, stride=1, wbits=4, abits=4))
    assert out_q.shape == (N, planes * 4, H, W)
    assert bool(jnp.all(jnp.isfinite(out_q)))

    print("KERNEL_OK")
</pallas_src>

<mosaic_0001>
module attributes {stable_mosaic.version = 11 : i64} {
  func.func @_bottleneck_kernel(%arg0: i32, %arg1: i32, %arg2: memref<1x288x128xf32, #tpu.memory_space<vmem>>, %arg3: memref<1x128xf32, #tpu.memory_space<vmem>>, %arg4: memref<1x128xf32, #tpu.memory_space<vmem>>, %arg5: memref<128x128xbf16, #tpu.memory_space<vmem>>, %arg6: memref<1x128xf32, #tpu.memory_space<vmem>>, %arg7: memref<128x1152xbf16, #tpu.memory_space<vmem>>, %arg8: memref<1x128xf32, #tpu.memory_space<vmem>>, %arg9: memref<128x128xbf16, #tpu.memory_space<vmem>>, %arg10: memref<1x128x128xf32, #tpu.memory_space<vmem>>) attributes {dimension_semantics = [#tpu.dimension_semantics<parallel>, #tpu.dimension_semantics<parallel>], iteration_bounds = array<i64: 2, 2>, scalar_prefetch = 0 : i64, scratch_operands = 0 : i64, tpu.core_type = #tpu.core_type<tc>, window_params = [{transform_indices = @transform_0, window_bounds = array<i64: 1, 288, 128>}, {pipeline_mode = #tpu.pipeline_mode<synchronous>, transform_indices = @transform_1, window_bounds = array<i64: 1, 128>}, {pipeline_mode = #tpu.pipeline_mode<synchronous>, transform_indices = @transform_2, window_bounds = array<i64: 1, 128>}, {pipeline_mode = #tpu.pipeline_mode<synchronous>, transform_indices = @transform_3, window_bounds = array<i64: 128, 128>}, {pipeline_mode = #tpu.pipeline_mode<synchronous>, transform_indices = @transform_4, window_bounds = array<i64: 1, 128>}, {pipeline_mode = #tpu.pipeline_mode<synchronous>, transform_indices = @transform_5, window_bounds = array<i64: 128, 1152>}, {pipeline_mode = #tpu.pipeline_mode<synchronous>, transform_indices = @transform_6, window_bounds = array<i64: 1, 128>}, {pipeline_mode = #tpu.pipeline_mode<synchronous>, transform_indices = @transform_7, window_bounds = array<i64: 128, 128>}, {transform_indices = @transform_8, window_bounds = array<i64: 1, 128, 128>}]} {
    %c128_i32 = arith.constant 128 : i32
    %0 = arith.muli %arg1, %c128_i32 : i32
    %1 = tpu.assume_multiple %0, 128 : i32
    %c0 = arith.constant 0 : index
    %2 = arith.index_cast %1 : i32 to index
    %c0_0 = arith.constant 0 : index
    %3 = vector.load %arg2[%c0, %2, %c0_0] : memref<1x288x128xf32, #tpu.memory_space<vmem>>, vector<1x160x128xf32>
    %4 = vector.shape_cast %3 : vector<1x160x128xf32> to vector<160x128xf32>
    %c0_1 = arith.constant 0 : index
    %c0_2 = arith.constant 0 : index
    %5 = vector.load %arg3[%c0_1, %c0_2] : memref<1x128xf32, #tpu.memory_space<vmem>>, vector<1x128xf32>
    %6 = vector.broadcast %5 : vector<1x128xf32> to vector<160x128xf32>
    %7 = arith.mulf %4, %6 : vector<160x128xf32>
    %c0_3 = arith.constant 0 : index
    %c0_4 = arith.constant 0 : index
    %8 = vector.load %arg4[%c0_3, %c0_4] : memref<1x128xf32, #tpu.memory_space<vmem>>, vector<1x128xf32>
    %9 = vector.broadcast %8 : vector<1x128xf32> to vector<160x128xf32>
    %10 = arith.addf %7, %9 : vector<160x128xf32>
    %cst = arith.constant 0.000000e+00 : f32
    %11 = vector.broadcast %cst : f32 to vector<160x128xf32>
    %12 = arith.maximumf %10, %11 : vector<160x128xf32>
    %13 = arith.truncf %12 : vector<160x128xf32> to vector<160x128xbf16>
    %c0_5 = arith.constant 0 : index
    %c0_6 = arith.constant 0 : index
    %14 = vector.load %arg5[%c0_5, %c0_6] : memref<128x128xbf16, #tpu.memory_space<vmem>>, vector<128x128xbf16>
    %cst_7 = arith.constant dense<0.000000e+00> : vector<160x128xf32>
    %15 = tpu.matmul %13, %14, %cst_7 {dimension_numbers = #tpu.dot_dimension_numbers<[1], [0], [0], [1], [0, 0, 1, 1], [], []>} : vector<160x128xbf16>, vector<128x128xbf16>, vector<160x128xf32> -> vector<160x128xf32>
    %c0_8 = arith.constant 0 : index
    %c0_9 = arith.constant 0 : index
    %16 = vector.load %arg6[%c0_8, %c0_9] : memref<1x128xf32, #tpu.memory_space<vmem>>, vector<1x128xf32>
    %17 = vector.broadcast %16 : vector<1x128xf32> to vector<160x128xf32>
    %18 = arith.addf %15, %17 : vector<160x128xf32>
    %cst_10 = arith.constant 0.000000e+00 : f32
    %19 = vector.broadcast %cst_10 : f32 to vector<160x128xf32>
    %20 = arith.maximumf %18, %19 : vector<160x128xf32>
    %21 = tpu.iota {dimensions = array<i32: 0>} : vector<160x1xi32>
    %c16_i32 = arith.constant 16 : i32
    %22 = vector.broadcast %c16_i32 : i32 to vector<160x1xi32>
    %23 = arith.cmpi slt, %21, %22 : vector<160x1xi32>
    %c0_i32 = arith.constant 0 : i32
    %24 = arith.cmpi eq, %arg1, %c0_i32 : i32
    %25 = vector.broadcast %24 : i1 to vector<160x1xi1>
    %26 = arith.andi %23, %25 : vector<160x1xi1>
    %c144_i32 = arith.constant 144 : i32
    %27 = vector.broadcast %c144_i32 : i32 to vector<160x1xi32>
    %28 = arith.cmpi sge, %21, %27 : vector<160x1xi32>
    %c1_i32 = arith.constant 1 : i32
    %29 = arith.cmpi eq, %arg1, %c1_i32 : i32
    %30 = vector.broadcast %29 : i1 to vector<160x1xi1>
    %31 = arith.andi %28, %30 : vector<160x1xi1>
    %32 = arith.ori %26, %31 : vector<160x1xi1>
    %cst_11 = arith.constant 0.000000e+00 : f32
    %33 = vector.shape_cast %32 : vector<160x1xi1> to vector<160x1xi1>
    %34 = vector.broadcast %33 : vector<160x1xi1> to vector<160x128xi1>
    %35 = vector.broadcast %cst_11 : f32 to vector<160x128xf32>
    %36 = arith.select %34, %35, %20 : vector<160x128xi1>, vector<160x128xf32>
    %37 = arith.truncf %36 : vector<160x128xf32> to vector<160x128xbf16>
    %c0_12 = arith.constant 0 : index
    %c0_13 = arith.constant 0 : index
    %38 = vector.load %arg7[%c0_12, %c0_13] : memref<128x1152xbf16, #tpu.memory_space<vmem>>, vector<128x1152xbf16>
    %cst_14 = arith.constant dense<0.000000e+00> : vector<160x1152xf32>
    %39 = tpu.matmul %37, %38, %cst_14 {dimension_numbers = #tpu.dot_dimension_numbers<[1], [0], [0], [1], [0, 0, 1, 1], [], []>} : vector<160x128xbf16>, vector<128x1152xbf16>, vector<160x1152xf32> -> vector<160x1152xf32>
    %40 = vector.extract_strided_slice %39 {offsets = [0, 0], sizes = [128, 128], strides = [1, 1]} : vector<160x1152xf32> to vector<128x128xf32>
    %41 = vector.extract_strided_slice %39 {offsets = [16, 384], sizes = [128, 128], strides = [1, 1]} : vector<160x1152xf32> to vector<128x128xf32>
    %42 = arith.addf %40, %41 : vector<128x128xf32>
    %43 = vector.extract_strided_slice %39 {offsets = [32, 768], sizes = [128, 128], strides = [1, 1]} : vector<160x1152xf32> to vector<128x128xf32>
    %44 = arith.addf %42, %43 : vector<128x128xf32>
    %45 = vector.extract_strided_slice %39 {offsets = [0, 128], sizes = [128, 128], strides = [1, 1]} : vector<160x1152xf32> to vector<128x128xf32>
    %46 = vector.extract_strided_slice %39 {offsets = [16, 512], sizes = [128, 128], strides = [1, 1]} : vector<160x1152xf32> to vector<128x128xf32>
    %47 = arith.addf %45, %46 : vector<128x128xf32>
    %48 = vector.extract_strided_slice %39 {offsets = [32, 896], sizes = [128, 128], strides = [1, 1]} : vector<160x1152xf32> to vector<128x128xf32>
    %49 = arith.addf %47, %48 : vector<128x128xf32>
    %50 = vector.extract_strided_slice %39 {offsets = [0, 256], sizes = [128, 128], strides = [1, 1]} : vector<160x1152xf32> to vector<128x128xf32>
    %51 = vector.extract_strided_slice %39 {offsets = [16, 640], sizes = [128, 128], strides = [1, 1]} : vector<160x1152xf32> to vector<128x128xf32>
    %52 = arith.addf %50, %51 : vector<128x128xf32>
    %53 = vector.extract_strided_slice %39 {offsets = [32, 1024], sizes = [128, 128], strides = [1, 1]} : vector<160x1152xf32> to vector<128x128xf32>
    %54 = arith.addf %52, %53 : vector<128x128xf32>
    %55 = tpu.iota {dimensions = array<i32: 0>} : vector<128x1xi32>
    %c16_i32_15 = arith.constant 16 : i32
    %c0_i32_16 = arith.constant 0 : i32
    %56 = arith.cmpi eq, %c16_i32_15, %c0_i32_16 : i32
    %c1_i32_17 = arith.constant 1 : i32
    %57 = arith.select %56, %c1_i32_17, %c16_i32_15 : i32
    %58 = vector.broadcast %57 : i32 to vector<128x1xi32>
    %59 = arith.remsi %55, %58 : vector<128x1xi32>
    %c0_i32_18 = arith.constant 0 : i32
    %60 = vector.broadcast %c0_i32_18 : i32 to vector<128x1xi32>
    %61 = arith.cmpi ne, %59, %60 : vector<128x1xi32>
    %c0_i32_19 = arith.constant 0 : i32
    %62 = vector.broadcast %c0_i32_19 : i32 to vector<128x1xi32>
    %63 = arith.cmpi slt, %59, %62 : vector<128x1xi32>
    %c0_i32_20 = arith.constant 0 : i32
    %64 = arith.cmpi slt, %57, %c0_i32_20 : i32
    %65 = vector.broadcast %64 : i1 to vector<128x1xi1>
    %66 = vector.broadcast %65 : vector<128x1xi1> to vector<128x1xi1>
    %67 = arith.xori %63, %66 : vector<128x1xi1>
    %68 = arith.andi %67, %61 : vector<128x1xi1>
    %69 = vector.broadcast %57 : i32 to vector<128x1xi32>
    %70 = arith.addi %59, %69 : vector<128x1xi32>
    %71 = arith.select %68, %70, %59 : vector<128x1xi1>, vector<128x1xi32>
    %c0_i32_21 = arith.constant 0 : i32
    %72 = vector.broadcast %c0_i32_21 : i32 to vector<128x1xi32>
    %73 = arith.cmpi sgt, %71, %72 : vector<128x1xi32>
    %c1_i32_22 = arith.constant 1 : i32
    %74 = tpu.dynamic_rotate %44 by %c1_i32_22 dim 0 : vector<128x128xf32>, i32 -> vector<128x128xf32>
    %cst_23 = arith.constant 0.000000e+00 : f32
    %75 = vector.shape_cast %73 : vector<128x1xi1> to vector<128x1xi1>
    %76 = vector.broadcast %75 : vector<128x1xi1> to vector<128x128xi1>
    %77 = vector.broadcast %cst_23 : f32 to vector<128x128xf32>
    %78 = arith.select %76, %74, %77 : vector<128x128xi1>, vector<128x128xf32>
    %79 = arith.addf %49, %78 : vector<128x128xf32>
    %c15_i32 = arith.constant 15 : i32
    %80 = vector.broadcast %c15_i32 : i32 to vector<128x1xi32>
    %81 = arith.cmpi slt, %71, %80 : vector<128x1xi32>
    %c127_i32 = arith.constant 127 : i32
    %82 = tpu.dynamic_rotate %54 by %c127_i32 dim 0 : vector<128x128xf32>, i32 -> vector<128x128xf32>
    %cst_24 = arith.constant 0.000000e+00 : f32
    %83 = vector.shape_cast %81 : vector<128x1xi1> to vector<128x1xi1>
    %84 = vector.broadcast %83 : vector<128x1xi1> to vector<128x128xi1>
    %85 = vector.broadcast %cst_24 : f32 to vector<128x128xf32>
    %86 = arith.select %84, %82, %85 : vector<128x128xi1>, vector<128x128xf32>
    %87 = arith.addf %79, %86 : vector<128x128xf32>
    %c0_25 = arith.constant 0 : index
    %c0_26 = arith.constant 0 : index
    %88 = vector.load %arg8[%c0_25, %c0_26] : memref<1x128xf32, #tpu.memory_space<vmem>>, vector<1x128xf32>
    %89 = vector.broadcast %88 : vector<1x128xf32> to vector<128x128xf32>
    %90 = arith.addf %87, %89 : vector<128x128xf32>
    %cst_27 = arith.constant 0.000000e+00 : f32
    %91 = vector.broadcast %cst_27 : f32 to vector<128x128xf32>
    %92 = arith.maximumf %90, %91 : vector<128x128xf32>
    %93 = arith.truncf %92 : vector<128x128xf32> to vector<128x128xbf16>
    %c128_i32_28 = arith.constant 128 : i32
    %94 = arith.muli %arg1, %c128_i32_28 : i32
    %c16_i32_29 = arith.constant 16 : i32
    %95 = arith.addi %94, %c16_i32_29 : i32
    %96 = tpu.assume_multiple %95, 16 : i32
    %c0_30 = arith.constant 0 : index
    %97 = arith.index_cast %96 : i32 to index
    %c0_31 = arith.constant 0 : index
    %98 = vector.load %arg2[%c0_30, %97, %c0_31] : memref<1x288x128xf32, #tpu.memory_space<vmem>>, vector<1x128x128xf32>
    %99 = vector.shape_cast %98 : vector<1x128x128xf32> to vector<128x128xf32>
    %c0_32 = arith.constant 0 : index
    %c0_33 = arith.constant 0 : index
    %100 = vector.load %arg9[%c0_32, %c0_33] : memref<128x128xbf16, #tpu.memory_space<vmem>>, vector<128x128xbf16>
    %cst_34 = arith.constant dense<0.000000e+00> : vector<128x128xf32>
    %101 = tpu.matmul %93, %100, %cst_34 {dimension_numbers = #tpu.dot_dimension_numbers<[1], [0], [0], [1], [0, 0, 1, 1], [], []>} : vector<128x128xbf16>, vector<128x128xbf16>, vector<128x128xf32> -> vector<128x128xf32>
    %102 = arith.addf %101, %99 : vector<128x128xf32>
    %c0_35 = arith.constant 0 : index
    %c0_36 = arith.constant 0 : index
    %c0_37 = arith.constant 0 : index
    %103 = vector.load %arg10[%c0_35, %c0_36, %c0_37] : memref<1x128x128xf32, #tpu.memory_space<vmem>>, vector<1x128x128xf32>
    %104 = vector.shape_cast %103 : vector<1x128x128xf32> to vector<128x128xf32>
    %105 = vector.shape_cast %102 : vector<128x128xf32> to vector<1x128x128xf32>
    tpu.vector_store %arg10[%c0_35, %c0_36, %c0_37], %105 {strides = array<i32>} : memref<1x128x128xf32, #tpu.memory_space<vmem>>, vector<1x128x128xf32>,
    return
  }
  func.func @transform_0(%arg0: i32, %arg1: i32) -> (i32, i32, i32) {
    %c0_i32 = arith.constant 0 : i32
    %c0_i32_0 = arith.constant 0 : i32
    %c0_i32_1 = arith.constant 0 : i32
    return %arg0, %c0_i32, %c0_i32_0 : i32, i32, i32
  }
  func.func @transform_1(%arg0: i32, %arg1: i32) -> (i32, i32) {
    %c0_i32 = arith.constant 0 : i32
    %c0_i32_0 = arith.constant 0 : i32
    %c0_i32_1 = arith.constant 0 : i32
    return %c0_i32, %c0_i32_0 : i32, i32
  }
  func.func @transform_2(%arg0: i32, %arg1: i32) -> (i32, i32) {
    %c0_i32 = arith.constant 0 : i32
    %c0_i32_0 = arith.constant 0 : i32
    %c0_i32_1 = arith.constant 0 : i32
    return %c0_i32, %c0_i32_0 : i32, i32
  }
  func.func @transform_3(%arg0: i32, %arg1: i32) -> (i32, i32) {
    %c0_i32 = arith.constant 0 : i32
    %c0_i32_0 = arith.constant 0 : i32
    %c0_i32_1 = arith.constant 0 : i32
    return %c0_i32, %c0_i32_0 : i32, i32
  }
  func.func @transform_4(%arg0: i32, %arg1: i32) -> (i32, i32) {
    %c0_i32 = arith.constant 0 : i32
    %c0_i32_0 = arith.constant 0 : i32
    %c0_i32_1 = arith.constant 0 : i32
    return %c0_i32, %c0_i32_0 : i32, i32
  }
  func.func @transform_5(%arg0: i32, %arg1: i32) -> (i32, i32) {
    %c0_i32 = arith.constant 0 : i32
    %c0_i32_0 = arith.constant 0 : i32
    %c0_i32_1 = arith.constant 0 : i32
    return %c0_i32, %c0_i32_0 : i32, i32
  }
  func.func @transform_6(%arg0: i32, %arg1: i32) -> (i32, i32) {
    %c0_i32 = arith.constant 0 : i32
    %c0_i32_0 = arith.constant 0 : i32
    %c0_i32_1 = arith.constant 0 : i32
    return %c0_i32, %c0_i32_0 : i32, i32
  }
  func.func @transform_7(%arg0: i32, %arg1: i32) -> (i32, i32) {
    %c0_i32 = arith.constant 0 : i32
    %c0_i32_0 = arith.constant 0 : i32
    %c0_i32_1 = arith.constant 0 : i32
    return %c0_i32, %c0_i32_0 : i32, i32
  }
  func.func @transform_8(%arg0: i32, %arg1: i32) -> (i32, i32, i32) {
    %c0_i32 = arith.constant 0 : i32
    %c0_i32_0 = arith.constant 0 : i32
    return %arg0, %arg1, %c0_i32 : i32, i32, i32
  }
}

</mosaic_0001>

<llo_original>
// kernel: tpu_custom_call.1
$region0: #{tpu_custom_call.1}
  #allocation0 [shape = 'u32[]', space=smem, size = 0x4, offset = 0x4, fixed_abs, tag = 'smem constant byte address 0x4 - core index']
  #allocation1 [shape = 'u32[144,128]{1,0:T(1,128)}', space=vmem, size = 0x12000, scoped, tag = 'internal scratch']
  %s0 = inlined_call_operand.hbm [shape: f32[2,288,128], index: 0, kind: input, shape index: {}]
  %s1 = inlined_call_operand.vmem [shape: f32[1,128], index: 1, kind: input, shape index: {}]
  %s2 = inlined_call_operand.vmem [shape: f32[1,128], index: 2, kind: input, shape index: {}]
  %s3 = inlined_call_operand.hbm [shape: bf16[128,128], index: 3, kind: input, shape index: {}]
  %s4 = inlined_call_operand.vmem [shape: f32[1,128], index: 4, kind: input, shape index: {}]
  %s5 = inlined_call_operand.hbm [shape: bf16[128,1152], index: 5, kind: input, shape index: {}]
  %s6 = inlined_call_operand.vmem [shape: f32[1,128], index: 6, kind: input, shape index: {}]
  %s7 = inlined_call_operand.hbm [shape: bf16[128,128], index: 7, kind: input, shape index: {}]
  %s8 = inlined_call_operand.hbm [shape: f32[2,256,128], index: 8, kind: output, shape index: {}]
  %s9 = sld [smem:[#allocation0]]
  $region81: #{tpu_custom_call.1} parent=0
    _
  %s11 = ssub.s32 1, %s9
  %s12 = scalar_select 0, %s11, %s9
  $region1: #{tpu_custom_call.1} parent=0
    #allocation2 [shape = 'u8[294912]{0}', space=vmem, size = 0x48000, scoped, tag = 'input window, operand 0']
    #allocation3 [shape = 's32[2]{0}', space=sflag, size = 0x8, scoped, tag = 'scoped memory for tpu_custom_call.1']
    #allocation4 [shape = 's32[2]{0}', space=sflag, size = 0x8, scoped, tag = 'scoped memory for tpu_custom_call.1']
    #allocation5 [shape = 'u8[32768]{0}', space=vmem, size = 0x8000, scoped, tag = 'input window, operand 3, single buffered']
    #allocation6 [shape = 's32[1]{0}', space=sflag, size = 0x4, scoped, tag = 'scoped memory for tpu_custom_call.1']
    #allocation7 [shape = 'u8[294912]{0}', space=vmem, size = 0x48000, scoped, tag = 'input window, operand 5, single buffered']
    #allocation8 [shape = 'u8[32768]{0}', space=vmem, size = 0x8000, scoped, tag = 'input window, operand 7, single buffered']
    #allocation9 [shape = 's32[1]{0}', space=sflag, size = 0x4, scoped, tag = 'scoped memory for tpu_custom_call.1']
    #allocation10 [shape = 'u8[131072]{0}', space=vmem, size = 0x20000, scoped, tag = 'output window, operand 0']
    %13 = vsyncpa [#allocation3], 0
    %s14 = scalar_lea.sflag [#allocation3], 1
    %15 = vsyncpa %s14, 0
    %16 = vsyncpa [#allocation6], 0
    %17 = vsyncpa [#allocation9], 0
    %18 = vsyncpa [#allocation4], 0
    %s19 = scalar_lea.sflag [#allocation4], 1
    %20 = vsyncpa %s19, 0
    loop: start=0, step=1, limit=6
    $region2: #{tpu_custom_call.1} parent=1 // loop_pre_header
      _
    $region3: #{tpu_custom_call.1} parent=1 // loop_header
      %s22 = sphi 0, %s26
      %p23 = scmp.ge.s32.totalorder %s22, 6
      %s29 = sphi 0, %s41
      %s30 = sphi 0, %s37
      %s31 = sphi 0, %s29
      %s32 = sphi 0, %s30
      %s33 = sphi 0, %s31
      %s34 = sphi 0, %s32
      %s44 = sphi 0, %s46
      %s47 = sphi 0, %s44
      %s48 = sphi 0, %s47
      %s64 = sphi 0, %s48
      %s68 = sphi 0, %s68
      %s70 = sphi 0, %s68
      %s71 = sphi 0, %s70
      %s85 = sphi 0, %s71
      %s89 = sphi 0, %s89
      %s91 = sphi 0, %s89
      %s92 = sphi 0, %s91
      %s106 = sphi 0, %s92
      %s110 = sphi 0, %s110
      %s112 = sphi 0, %s110
      %s113 = sphi 0, %s112
      %s127 = sphi 0, %s113
      %s131 = sphi 0, %s131
      %s133 = sphi 0, %s131
      %s134 = sphi 0, %s133
      %s148 = sphi 0, %s134
      %s152 = sphi 0, %s152
      %s154 = sphi 0, %s152
      %s155 = sphi 0, %s154
      %s169 = sphi 0, %s155
      %s173 = sphi 0, %s173
      %s175 = sphi 0, %s173
      %s176 = sphi 0, %s175
      %s190 = sphi 0, %s176
      %s194 = sphi 0, %s194
      %s196 = sphi 0, %s194
      %s197 = sphi 0, %s196
      %s211 = sphi 0, %s197
      %s219 = sphi 0, %s221
      %s222 = sphi 0, %s219
      %s223 = sphi 0, %s222
      %s239 = sphi 0, %s223
    $region4: #{tpu_custom_call.1} parent=1 // loop_header_branch
      %25 = sbr.rel (%p23) target = $region8
    $region5: #{tpu_custom_call.1} parent=1 // loop_body
      %s27 = ssub.s32 %s22, 1
      %s28 = ssub.s32 %s22, 2
      %s35 = sadd.s32 1, %s30
      %p36 = scmp.ge.s32.totalorder %s35, 2
      %s37 = scalar_select %p36, 0, %s35
      %s38 = sadd.s32 1, %s29
      %s39 = scalar_select %p36, %s38, %s29
      %p40 = scmp.ge.s32.totalorder %s39, 2
      %s41 = scalar_select %p40, 0, %s39
      %s42 = ssub.s32 %s29, %s41
      %p43 = scmp.eq.s32.totalorder %s42, 0
      %s45 = sadd.s32 %s44, 1
      %s46 = scalar_select %p43, %s44, %s45
      %p49 = pneg %p43
      %p50 = scmp.eq.s32.totalorder %s22, 3
      %p51 = por %p49, %p50
      %p52 = scmp.ne.s32.totalorder %s44, %s47
      %p53 = scmp.eq.s32.totalorder %s22, 0
      %p54 = por %p52, %p53
      %p55 = scmp.ne.s32.totalorder %s44, %s47
      %p56 = scmp.eq.s32.totalorder %s27, 3
      %p57 = por %p55, %p56
      %p58 = scmp.ne.s32.totalorder %s47, %s48
      %p59 = scmp.eq.s32.totalorder %s27, 0
      %p60 = por %p58, %p59
      %p61 = scmp.ne.s32.totalorder %s47, %s48
      %p62 = scmp.eq.s32.totalorder %s28, 3
      %p63 = por %p61, %p62
      %p65 = scmp.ne.s32.totalorder %s48, %s64
      %p66 = scmp.eq.s32.totalorder %s28, 0
      %p67 = por %p65, %p66
      %s69 = sadd.s32 %s68, 1
      %p72 = scmp.eq.s32.totalorder %s22, 3
      %p73 = scmp.ne.s32.totalorder %s68, %s70
      %p74 = scmp.eq.s32.totalorder %s22, 0
      %p75 = por %p73, %p74
      %p76 = scmp.ne.s32.totalorder %s68, %s70
      %p77 = scmp.eq.s32.totalorder %s27, 3
      %p78 = por %p76, %p77
      %p79 = scmp.ne.s32.totalorder %s70, %s71
      %p80 = scmp.eq.s32.totalorder %s27, 0
      %p81 = por %p79, %p80
      %p82 = scmp.ne.s32.totalorder %s70, %s71
      %p83 = scmp.eq.s32.totalorder %s28, 3
      %p84 = por %p82, %p83
      %p86 = scmp.ne.s32.totalorder %s71, %s85
      %p87 = scmp.eq.s32.totalorder %s28, 0
      %p88 = por %p86, %p87
      %s90 = sadd.s32 %s89, 1
      %p93 = scmp.eq.s32.totalorder %s22, 3
      %p94 = scmp.ne.s32.totalorder %s89, %s91
      %p95 = scmp.eq.s32.totalorder %s22, 0
      %p96 = por %p94, %p95
      %p97 = scmp.ne.s32.totalorder %s89, %s91
      %p98 = scmp.eq.s32.totalorder %s27, 3
      %p99 = por %p97, %p98
      %p100 = scmp.ne.s32.totalorder %s91, %s92
      %p101 = scmp.eq.s32.totalorder %s27, 0
      %p102 = por %p100, %p101
      %p103 = scmp.ne.s32.totalorder %s91, %s92
      %p104 = scmp.eq.s32.totalorder %s28, 3
      %p105 = por %p103, %p104
      %p107 = scmp.ne.s32.totalorder %s92, %s106
      %p108 = scmp.eq.s32.totalorder %s28, 0
      %p109 = por %p107, %p108
      %s111 = sadd.s32 %s110, 1
      %p114 = scmp.eq.s32.totalorder %s22, 3
      %p115 = scmp.ne.s32.totalorder %s110, %s112
      %p116 = scmp.eq.s32.totalorder %s22, 0
      %p117 = por %p115, %p116
      %p118 = scmp.ne.s32.totalorder %s110, %s112
      %p119 = scmp.eq.s32.totalorder %s27, 3
      %p120 = por %p118, %p119
      %p121 = scmp.ne.s32.totalorder %s112, %s113
      %p122 = scmp.eq.s32.totalorder %s27, 0
      %p123 = por %p121, %p122
      %p124 = scmp.ne.s32.totalorder %s112, %s113
      %p125 = scmp.eq.s32.totalorder %s28, 3
      %p126 = por %p124, %p125
      %p128 = scmp.ne.s32.totalorder %s113, %s127
      %p129 = scmp.eq.s32.totalorder %s28, 0
      %p130 = por %p128, %p129
      %s132 = sadd.s32 %s131, 1
      %p135 = scmp.eq.s32.totalorder %s22, 3
      %p136 = scmp.ne.s32.totalorder %s131, %s133
      %p137 = scmp.eq.s32.totalorder %s22, 0
      %p138 = por %p136, %p137
      %p139 = scmp.ne.s32.totalorder %s131, %s133
      %p140 = scmp.eq.s32.totalorder %s27, 3
      %p141 = por %p139, %p140
      %p142 = scmp.ne.s32.totalorder %s133, %s134
      %p143 = scmp.eq.s32.totalorder %s27, 0
      %p144 = por %p142, %p143
      %p145 = scmp.ne.s32.totalorder %s133, %s134
      %p146 = scmp.eq.s32.totalorder %s28, 3
      %p147 = por %p145, %p146
      %p149 = scmp.ne.s32.totalorder %s134, %s148
      %p150 = scmp.eq.s32.totalorder %s28, 0
      %p151 = por %p149, %p150
      %s153 = sadd.s32 %s152, 1
      %p156 = scmp.eq.s32.totalorder %s22, 3
      %p157 = scmp.ne.s32.totalorder %s152, %s154
      %p158 = scmp.eq.s32.totalorder %s22, 0
      %p159 = por %p157, %p158
      %p160 = scmp.ne.s32.totalorder %s152, %s154
      %p161 = scmp.eq.s32.totalorder %s27, 3
      %p162 = por %p160, %p161
      %p163 = scmp.ne.s32.totalorder %s154, %s155
      %p164 = scmp.eq.s32.totalorder %s27, 0
      %p165 = por %p163, %p164
      %p166 = scmp.ne.s32.totalorder %s154, %s155
      %p167 = scmp.eq.s32.totalorder %s28, 3
      %p168 = por %p166, %p167
      %p170 = scmp.ne.s32.totalorder %s155, %s169
      %p171 = scmp.eq.s32.totalorder %s28, 0
      %p172 = por %p170, %p171
      %s174 = sadd.s32 %s173, 1
      %p177 = scmp.eq.s32.totalorder %s22, 3
      %p178 = scmp.ne.s32.totalorder %s173, %s175
      %p179 = scmp.eq.s32.totalorder %s22, 0
      %p180 = por %p178, %p179
      %p181 = scmp.ne.s32.totalorder %s173, %s175
      %p182 = scmp.eq.s32.totalorder %s27, 3
      %p183 = por %p181, %p182
      %p184 = scmp.ne.s32.totalorder %s175, %s176
      %p185 = scmp.eq.s32.totalorder %s27, 0
      %p186 = por %p184, %p185
      %p187 = scmp.ne.s32.totalorder %s175, %s176
      %p188 = scmp.eq.s32.totalorder %s28, 3
      %p189 = por %p187, %p188
      %p191 = scmp.ne.s32.totalorder %s176, %s190
      %p192 = scmp.eq.s32.totalorder %s28, 0
      %p193 = por %p191, %p192
      %s195 = sadd.s32 %s194, 1
      %p198 = scmp.eq.s32.totalorder %s22, 3
      %p199 = scmp.ne.s32.totalorder %s194, %s196
      %p200 = scmp.eq.s32.totalorder %s22, 0
      %p201 = por %p199, %p200
      %p202 = scmp.ne.s32.totalorder %s194, %s196
      %p203 = scmp.eq.s32.totalorder %s27, 3
      %p204 = por %p202, %p203
      %p205 = scmp.ne.s32.totalorder %s196, %s197
      %p206 = scmp.eq.s32.totalorder %s27, 0
      %p207 = por %p205, %p206
      %p208 = scmp.ne.s32.totalorder %s196, %s197
      %p209 = scmp.eq.s32.totalorder %s28, 3
      %p210 = por %p208, %p209
      %p212 = scmp.ne.s32.totalorder %s197, %s211
      %p213 = scmp.eq.s32.totalorder %s28, 0
      %p214 = por %p212, %p213
      %s215 = ssub.s32 %s29, %s41
      %s216 = ssub.s32 %s30, %s37
      %s217 = sor.u32 %s215, %s216
      %p218 = scmp.eq.s32.totalorder %s217, 0
      %s220 = sadd.s32 %s219, 1
      %s221 = scalar_select %p218, %s219, %s220
      %p224 = pneg %p218
      %p225 = scmp.eq.s32.totalorder %s22, 3
      %p226 = por %p224, %p225
      %p227 = scmp.ne.s32.totalorder %s219, %s222
      %p228 = scmp.eq.s32.totalorder %s22, 0
      %p229 = por %p227, %p228
      %p230 = scmp.ne.s32.totalorder %s219, %s222
      %p231 = scmp.eq.s32.totalorder %s27, 3
      %p232 = por %p230, %p231
      %p233 = scmp.ne.s32.totalorder %s222, %s223
      %p234 = scmp.eq.s32.totalorder %s27, 0
      %p235 = por %p233, %p234
      %p236 = scmp.ne.s32.totalorder %s222, %s223
      %p237 = scmp.eq.s32.totalorder %s28, 3
      %p238 = por %p236, %p237
      %p240 = scmp.ne.s32.totalorder %s223, %s239
      %p241 = scmp.eq.s32.totalorder %s28, 0
      %p242 = por %p240, %p241
      %p243 = scmp.le.s32.totalorder 1, %s22
      %p244 = scmp.lt.s32.totalorder %s22, 5
      %p245 = pnand %p243, %p244
      %p246 = pneg %p245
      // Predicated region
      $region9: #{tpu_custom_call.1} parent=5 // pred_check
        _
      $region10: #{tpu_custom_call.1} parent=5 // pred_check_branch
        %248 = sbr.rel (%p245) target = $region12
      $region11: #{tpu_custom_call.1} parent=5 // pred_region
        %s249 = ssub.s32 %s22, 1
        // Predicated region
        $region13: #{tpu_custom_call.1} parent=11 // pred_check
          %p250 = pneg %p81
        $region14: #{tpu_custom_call.1} parent=11 // pred_check_branch
          %252 = sbr.rel (%p250) target = $region16
        $region15: #{tpu_custom_call.1} parent=11 // pred_region
          _
        $region16: #{tpu_custom_call.1} parent=11 // pred_fallthru
          _
        // Predicated region
        $region17: #{tpu_custom_call.1} parent=11 // pred_check
          %p253 = pneg %p102
        $region18: #{tpu_custom_call.1} parent=11 // pred_check_branch
          %255 = sbr.rel (%p253) target = $region20
        $region19: #{tpu_custom_call.1} parent=11 // pred_region
          _
        $region20: #{tpu_custom_call.1} parent=11 // pred_fallthru
          _
        // Predicated region
        $region21: #{tpu_custom_call.1} parent=11 // pred_check
          %p256 = pneg %p123
        $region22: #{tpu_custom_call.1} parent=11 // pred_check_branch
          %258 = sbr.rel (%p256) target = $region24
        $region23: #{tpu_custom_call.1} parent=11 // pred_region
          %s260 = ssub.s32 1024, 1024
          %261 = vsyncadd [#allocation6], %s260
          %s262 = sshll.u32 [#allocation5], 4
          %s263 = int_to_ptr.vmem [resolvable:$true] %s262
          %268 = dma.hbm_to_vmem [thread:$0]  %s3, 1024, %s263, [#allocation6], 64, 64, 4
        $region24: #{tpu_custom_call.1} parent=11 // pred_fallthru
          _
        // Predicated region
        $region25: #{tpu_custom_call.1} parent=11 // pred_check
          %p269 = pneg %p144
        $region26: #{tpu_custom_call.1} parent=11 // pred_check_branch
          %271 = sbr.rel (%p269) target = $region28
        $region27: #{tpu_custom_call.1} parent=11 // pred_region
          _
        $region28: #{tpu_custom_call.1} parent=11 // pred_fallthru
          _
        // Predicated region
        $region29: #{tpu_custom_call.1} parent=11 // pred_check
          %p272 = pneg %p165
        $region30: #{tpu_custom_call.1} parent=11 // pred_check_branch
          %274 = sbr.rel (%p272) target = $region32
        $region31: #{tpu_custom_call.1} parent=11 // pred_region
          %s276 = ssub.s32 9216, 9216
          %277 = vsyncadd [#allocation6], %s276
          %s278 = sshll.u32 [#allocation7], 4
          %s279 = int_to_ptr.vmem [resolvable:$true] %s278
          %284 = dma.hbm_to_vmem [thread:$0]  %s5, 9216, %s279, [#allocation6], 576, 576, 36
        $region32: #{tpu_custom_call.1} parent=11 // pred_fallthru
          _
        // Predicated region
        $region33: #{tpu_custom_call.1} parent=11 // pred_check
          %p285 = pneg %p186
        $region34: #{tpu_custom_call.1} parent=11 // pred_check_branch
          %287 = sbr.rel (%p285) target = $region36
        $region35: #{tpu_custom_call.1} parent=11 // pred_region
          _
        $region36: #{tpu_custom_call.1} parent=11 // pred_fallthru
          _
        // Predicated region
        $region37: #{tpu_custom_call.1} parent=11 // pred_check
          %p288 = pneg %p207
        $region38: #{tpu_custom_call.1} parent=11 // pred_check_branch
          %290 = sbr.rel (%p288) target = $region40
        $region39: #{tpu_custom_call.1} parent=11 // pred_region
          %s292 = ssub.s32 1024, 1024
          %293 = vsyncadd [#allocation9], %s292
          %s294 = sshll.u32 [#allocation8], 4
          %s295 = int_to_ptr.vmem [resolvable:$true] %s294
          %300 = dma.hbm_to_vmem [thread:$0]  %s7, 1024, %s295, [#allocation9], 64, 64, 4
        $region40: #{tpu_custom_call.1} parent=11 // pred_fallthru
          _
      $region12: #{tpu_custom_call.1} parent=5 // pred_fallthru
        _
      %p301 = scmp.lt.s32.totalorder %s22, 4
      // Predicated region
      $region41: #{tpu_custom_call.1} parent=5 // pred_check
        %p302 = pneg %p301
      $region42: #{tpu_custom_call.1} parent=5 // pred_check_branch
        %304 = sbr.rel (%p302) target = $region44
      $region43: #{tpu_custom_call.1} parent=5 // pred_region
        // Predicated region
        $region45: #{tpu_custom_call.1} parent=43 // pred_check
          %p305 = pneg %p54
        $region46: #{tpu_custom_call.1} parent=43 // pred_check_branch
          %307 = sbr.rel (%p305) target = $region48
        $region47: #{tpu_custom_call.1} parent=43 // pred_region
          %s308 = sand.u32 %s44, 1
          %s309 = scalar_lea.sflag [#allocation3], %s308
          %s310 = sand.u32 %s44, 1
          %s311 = smul.addr %s310, 288
          %s312 = scalar_lea.vmem [#allocation2], %s311
          %s314 = ssub.s32 4608, 4608
          %315 = vsyncadd %s309, %s314
          %s316 = smul.addr %s29, 36
          %s317 = smul.addr %s316, 128
          %s318 = scalar_lea.hbm %s0, %s317
          %s319 = sshll.u32 %s312, 4
          %s320 = int_to_ptr.vmem [resolvable:$true] %s319
          %325 = dma.hbm_to_vmem [thread:$0]  %s318, 4608, %s320, %s309, 128, 128, 8
        $region48: #{tpu_custom_call.1} parent=43 // pred_fallthru
          _
      $region44: #{tpu_custom_call.1} parent=5 // pred_fallthru
        _
      %p326 = scmp.le.s32.totalorder 1, %s22
      %p327 = scmp.lt.s32.totalorder %s22, 5
      %p328 = pnand %p326, %p327
      %p329 = pneg %p328
      // Predicated region
      $region49: #{tpu_custom_call.1} parent=5 // pred_check
        _
      $region50: #{tpu_custom_call.1} parent=5 // pred_check_branch
        %331 = sbr.rel (%p328) target = $region52
      $region51: #{tpu_custom_call.1} parent=5 // pred_region
        %s332 = ssub.s32 %s22, 1
        %s333 = sand.u32 %s47, 1
        %s334 = scalar_lea.sflag [#allocation3], %s333
        %s335 = sand.u32 %s47, 1
        %s336 = smul.addr %s335, 288
        %s337 = scalar_lea.vmem [#allocation2], %s336
        // Predicated region
        $region53: #{tpu_custom_call.1} parent=51 // pred_check
          %p338 = pneg %p60
        $region54: #{tpu_custom_call.1} parent=51 // pred_check_branch
          %340 = sbr.rel (%p338) target = $region56
        $region55: #{tpu_custom_call.1} parent=51 // pred_region
          %341 = dma.done %s334, 4608
        $region56: #{tpu_custom_call.1} parent=51 // pred_fallthru
          _
        // Predicated region
        $region57: #{tpu_custom_call.1} parent=51 // pred_check
          %p342 = pneg %p123
        $region58: #{tpu_custom_call.1} parent=51 // pred_check_branch
          %344 = sbr.rel (%p342) target = $region60
        $region59: #{tpu_custom_call.1} parent=51 // pred_region
          %345 = dma.done [#allocation6], 1024
        $region60: #{tpu_custom_call.1} parent=51 // pred_fallthru
          _
        // Predicated region
        $region61: #{tpu_custom_call.1} parent=51 // pred_check
          %p346 = pneg %p165
        $region62: #{tpu_custom_call.1} parent=51 // pred_check_branch
          %348 = sbr.rel (%p346) target = $region64
        $region63: #{tpu_custom_call.1} parent=51 // pred_region
          %349 = dma.done [#allocation6], 9216
        $region64: #{tpu_custom_call.1} parent=51 // pred_fallthru
          _
        // Predicated region
        $region65: #{tpu_custom_call.1} parent=51 // pred_check
          %p350 = pneg %p207
        $region66: #{tpu_custom_call.1} parent=51 // pred_check_branch
          %352 = sbr.rel (%p350) target = $region68
        $region67: #{tpu_custom_call.1} parent=51 // pred_region
          %353 = dma.done [#allocation9], 1024
        $region68: #{tpu_custom_call.1} parent=51 // pred_fallthru
          _
        %s354 = sand.u32 %s47, 1
        %s355 = scalar_lea.sflag [#allocation3], %s354
        %s356 = sand.u32 %s47, 1
        %s357 = smul.addr %s356, 288
        %s358 = scalar_lea.vmem [#allocation2], %s357
        %p359 = pneg %p60
        %p360 = pneg %p57
        %p361 = pneg %p81
        %p362 = pneg %p78
        %p363 = pneg %p102
        %p364 = pneg %p99
        %p365 = pneg %p123
        %p366 = pneg %p120
        %p367 = pneg %p144
        %p368 = pneg %p141
        %p369 = pneg %p165
        %p370 = pneg %p162
        %p371 = pneg %p186
        %p372 = pneg %p183
        %p373 = pneg %p207
        %p374 = pneg %p204
        %p375 = pneg %p235
        %p376 = pneg %p232
        %s377 = sand.u32 %s222, 1
        %s378 = scalar_lea.sflag [#allocation4], %s377
        %s379 = sand.u32 %s222, 1
        %s380 = smul.addr %s379, 128
        %s381 = scalar_lea.vmem [#allocation10], %s380
        %s382 = smul.u32 16, %s32
        %s384 = smul.u32 %s32, 128
        %s385 = scalar_lea.vmem %s337, %s384 [#allocation2]
        %v386 = vld [vmem:[%s385] sm:$0xff]
        %v387 = vld [vmem:[%s385 + $0x8] sm:$0xff]
        %v388 = vld [vmem:[%s385 + $0x10] sm:$0xff]
        %v389 = vld [vmem:[%s385 + $0x18] sm:$0xff]
        %v390 = vld [vmem:[%s385 + $0x20] sm:$0xff]
        %v391 = vld [vmem:[%s385 + $0x28] sm:$0xff]
        %v392 = vld [vmem:[%s385 + $0x30] sm:$0xff]
        %v393 = vld [vmem:[%s385 + $0x38] sm:$0xff]
        %v394 = vld [vmem:[%s385 + $0x40] sm:$0xff]
        %v395 = vld [vmem:[%s385 + $0x48] sm:$0xff]
        %v396 = vld [vmem:[%s385 + $0x50] sm:$0xff]
        %v397 = vld [vmem:[%s385 + $0x58] sm:$0xff]
        %v398 = vld [vmem:[%s385 + $0x60] sm:$0xff]
        %v399 = vld [vmem:[%s385 + $0x68] sm:$0xff]
        %v400 = vld [vmem:[%s385 + $0x70] sm:$0xff]
        %v401 = vld [vmem:[%s385 + $0x78] sm:$0xff]
        %v402 = vld [vmem:[%s385 + $0x80] sm:$0xff]
        %v403 = vld [vmem:[%s385 + $0x88] sm:$0xff]
        %v404 = vld [vmem:[%s385 + $0x90] sm:$0xff]
        %v405 = vld [vmem:[%s385 + $0x98] sm:$0xff]
        %v406 = vld [vmem:[%s1] sm:$0x1]
        %v408 = vlaneseq
        %v409 = vshrl.u32 %v408, 7
        %v410 = vsub.s32 0, %v409
        %v411 = vrot.slane %v406, %v410
        %v413 = vmul.f32 %v386, %v411
        %v414 = vmul.f32 %v387, %v411
        %v415 = vmul.f32 %v388, %v411
        %v416 = vmul.f32 %v389, %v411
        %v417 = vmul.f32 %v390, %v411
        %v418 = vmul.f32 %v391, %v411
        %v419 = vmul.f32 %v392, %v411
        %v420 = vmul.f32 %v393, %v411
        %v421 = vmul.f32 %v394, %v411
        %v422 = vmul.f32 %v395, %v411
        %v423 = vmul.f32 %v396, %v411
        %v424 = vmul.f32 %v397, %v411
        %v425 = vmul.f32 %v398, %v411
        %v426 = vmul.f32 %v399, %v411
        %v427 = vmul.f32 %v400, %v411
        %v428 = vmul.f32 %v401, %v411
        %v429 = vmul.f32 %v402, %v411
        %v430 = vmul.f32 %v403, %v411
        %v431 = vmul.f32 %v404, %v411
        %v432 = vmul.f32 %v405, %v411
        %v433 = vld [vmem:[%s2] sm:$0x1]
        %v435 = vlaneseq
        %v436 = vshrl.u32 %v435, 7
        %v437 = vsub.s32 0, %v436
        %v438 = vrot.slane %v433, %v437
        %v440 = vadd.f32 %v413, %v438
        %v441 = vadd.f32 %v414, %v438
        %v442 = vadd.f32 %v415, %v438
        %v443 = vadd.f32 %v416, %v438
        %v444 = vadd.f32 %v417, %v438
        %v445 = vadd.f32 %v418, %v438
        %v446 = vadd.f32 %v419, %v438
        %v447 = vadd.f32 %v420, %v438
        %v448 = vadd.f32 %v421, %v438
        %v449 = vadd.f32 %v422, %v438
        %v450 = vadd.f32 %v423, %v438
        %v451 = vadd.f32 %v424, %v438
        %v452 = vadd.f32 %v425, %v438
        %v453 = vadd.f32 %v426, %v438
        %v454 = vadd.f32 %v427, %v438
        %v455 = vadd.f32 %v428, %v438
        %v456 = vadd.f32 %v429, %v438
        %v457 = vadd.f32 %v430, %v438
        %v458 = vadd.f32 %v431, %v438
        %v459 = vadd.f32 %v432, %v438
        %v460 = vmax.f32 %v440, 0.0
        %v461 = vmax.f32 %v441, 0.0
        %v462 = vmax.f32 %v442, 0.0
        %v463 = vmax.f32 %v443, 0.0
        %v464 = vmax.f32 %v444, 0.0
        %v465 = vmax.f32 %v445, 0.0
        %v466 = vmax.f32 %v446, 0.0
        %v467 = vmax.f32 %v447, 0.0
        %v468 = vmax.f32 %v448, 0.0
        %v469 = vmax.f32 %v449, 0.0
        %v470 = vmax.f32 %v450, 0.0
        %v471 = vmax.f32 %v451, 0.0
        %v472 = vmax.f32 %v452, 0.0
        %v473 = vmax.f32 %v453, 0.0
        %v474 = vmax.f32 %v454, 0.0
        %v475 = vmax.f32 %v455, 0.0
        %v476 = vmax.f32 %v456, 0.0
        %v477 = vmax.f32 %v457, 0.0
        %v478 = vmax.f32 %v458, 0.0
        %v479 = vmax.f32 %v459, 0.0
        %v480 = vpack.c.bf16 %v461, %v460
        %v481 = vpack.c.bf16 %v463, %v462
        %v482 = vpack.c.bf16 %v465, %v464
        %v483 = vpack.c.bf16 %v467, %v466
        %v484 = vpack.c.bf16 %v469, %v468
        %v485 = vpack.c.bf16 %v471, %v470
        %v486 = vpack.c.bf16 %v473, %v472
        %v487 = vpack.c.bf16 %v475, %v474
        %v488 = vpack.c.bf16 %v477, %v476
        %v489 = vpack.c.bf16 %v479, %v478
        %v490 = vld [vmem:[#allocation5] sm:$0xf]
        %v491 = vld [vmem:[#allocation5 + $0x4] sm:$0xf]
        %v492 = vld [vmem:[#allocation5 + $0x8] sm:$0xf]
        %v493 = vld [vmem:[#allocation5 + $0xc] sm:$0xf]
        %v494 = vld [vmem:[#allocation5 + $0x10] sm:$0xf]
        %v495 = vld [vmem:[#allocation5 + $0x14] sm:$0xf]
        %v496 = vld [vmem:[#allocation5 + $0x18] sm:$0xf]
        %v497 = vld [vmem:[#allocation5 + $0x1c] sm:$0xf]
        %v498 = vld [vmem:[#allocation5 + $0x20] sm:$0xf]
        %v499 = vld [vmem:[#allocation5 + $0x24] sm:$0xf]
        %v500 = vld [vmem:[#allocation5 + $0x28] sm:$0xf]
        %v501 = vld [vmem:[#allocation5 + $0x2c] sm:$0xf]
        %v502 = vld [vmem:[#allocation5 + $0x30] sm:$0xf]
        %v503 = vld [vmem:[#allocation5 + $0x34] sm:$0xf]
        %v504 = vld [vmem:[#allocation5 + $0x38] sm:$0xf]
        %v505 = vld [vmem:[#allocation5 + $0x3c] sm:$0xf]
        %v506 = vld [vmem:[%s4] sm:$0x1]
        %v508 = vlaneseq
        %v509 = vshrl.u32 %v508, 7
        %v510 = vsub.s32 0, %v509
        %v511 = vrot.slane %v506, %v510
        %v529 = vunpack.c.l.b16 %v490
        %v530 = vunpack.c.l.b16 %v491
        %v531 = vunpack.c.l.b16 %v492
        %v532 = vunpack.c.l.b16 %v493
        %v533 = vunpack.c.l.b16 %v494
        %v534 = vunpack.c.l.b16 %v495
        %v535 = vunpack.c.l.b16 %v496
        %v536 = vunpack.c.l.b16 %v497
        %v537 = vunpack.c.l.b16 %v498
        %v538 = vunpack.c.l.b16 %v499
        %v539 = vunpack.c.l.b16 %v500
        %v540 = vunpack.c.l.b16 %v501
        %v541 = vunpack.c.l.b16 %v502
        %v542 = vunpack.c.l.b16 %v503
        %v543 = vunpack.c.l.b16 %v504
        %v544 = vunpack.c.l.b16 %v505
        %v545 = vpack.c.b16 %v530, %v529
        %v546 = vpack.c.b16 %v532, %v531
        %v547 = vpack.c.b16 %v534, %v533
        %v548 = vpack.c.b16 %v536, %v535
        %v549 = vpack.c.b16 %v538, %v537
        %v550 = vpack.c.b16 %v540, %v539
        %v551 = vpack.c.b16 %v542, %v541
        %v552 = vpack.c.b16 %v544, %v543
        %561 = vmatprep.subr.bf16.mxu0 0
        %562 = vmatpush1.bf16.msra.mxu0 %v552
        %563 = vmatprep.subr.bf16.mxu0 0
        %564 = vmatpush1.bf16.msra.mxu0 %v551
        %565 = vmatprep.subr.bf16.mxu0 0
        %566 = vmatpush1.bf16.msra.mxu0 %v550
        %567 = vmatprep.subr.bf16.mxu0 0
        %568 = vmatpush1.bf16.msra.mxu0 %v549
        %569 = vmatprep.subr.bf16.mxu0 0
        %570 = vmatpush1.bf16.msra.mxu0 %v548
        %571 = vmatprep.subr.bf16.mxu0 0
        %572 = vmatpush1.bf16.msra.mxu0 %v547
        %573 = vmatprep.subr.bf16.mxu0 0
        %574 = vmatpush1.bf16.msra.mxu0 %v546
        %575 = vmatprep.subr.bf16.mxu0 0
        %576 = vmatpush1.bf16.msra.mxu0 %v545
        %577 = vmatprep.subr.bf16.mxu0 0
        %578 = vmatpush2.bf16.msra.mxu0 0
        %579 = vmatprep.subr.bf16.mxu0 0
        %580 = vmatpush2.bf16.msra.mxu0 0
        %581 = vmatprep.subr.bf16.mxu0 0
        %582 = vmatpush2.bf16.msra.mxu0 0
        %583 = vmatprep.subr.bf16.mxu0 0
        %584 = vmatpush2.bf16.msra.mxu0 0
        %585 = vmatprep.subr.bf16.mxu0 0
        %586 = vmatpush2.bf16.msra.mxu0 0
        %587 = vmatprep.subr.bf16.mxu0 0
        %588 = vmatpush2.bf16.msra.mxu0 0
        %589 = vmatprep.subr.bf16.mxu0 0
        %590 = vmatpush2.bf16.msra.mxu0 0
        %591 = vmatprep.subr.bf16.mxu0 0
        %592 = vmatpush2.bf16.msra.mxu0 0
        %593 = vmatprep.mubr.bf16.mxu0 0
        %594 = vmatmul.mubr.bf16.gmra.mxu0 %v480
        %v595 = vpop.f32.mrf.mxu0
        %v596 = vadd.f32 %v511, %v595
        %v597 = vpop.f32.mrf.mxu0
        %v598 = vpop.f32.mrf.mxu0
        %v599 = vadd.f32 %v511, %v598
        %v600 = vpop.f32.mrf.mxu0
        %601 = vmatprep.mubr.bf16.mxu0 0
        %602 = vmatmul.mubr.bf16.gmra.mxu0 %v481
        %v603 = vpop.f32.mrf.mxu0
        %v604 = vadd.f32 %v511, %v603
        %v605 = vpop.f32.mrf.mxu0
        %v606 = vpop.f32.mrf.mxu0
        %v607 = vadd.f32 %v511, %v606
        %v608 = vpop.f32.mrf.mxu0
        %609 = vmatprep.mubr.bf16.mxu0 0
        %610 = vmatmul.mubr.bf16.gmra.mxu0 %v482
        %v611 = vpop.f32.mrf.mxu0
        %v612 = vadd.f32 %v511, %v611
        %v613 = vpop.f32.mrf.mxu0
        %v614 = vpop.f32.mrf.mxu0
        %v615 = vadd.f32 %v511, %v614
        %v616 = vpop.f32.mrf.mxu0
        %617 = vmatprep.mubr.bf16.mxu0 0
        %618 = vmatmul.mubr.bf16.gmra.mxu0 %v483
        %v619 = vpop.f32.mrf.mxu0
        %v620 = vadd.f32 %v511, %v619
        %v621 = vpop.f32.mrf.mxu0
        %v622 = vpop.f32.mrf.mxu0
        %v623 = vadd.f32 %v511, %v622
        %v624 = vpop.f32.mrf.mxu0
        %625 = vmatprep.mubr.bf16.mxu0 0
        %626 = vmatmul.mubr.bf16.gmra.mxu0 %v484
        %v627 = vpop.f32.mrf.mxu0
        %v628 = vadd.f32 %v511, %v627
        %v629 = vpop.f32.mrf.mxu0
        %v630 = vpop.f32.mrf.mxu0
        %v631 = vadd.f32 %v511, %v630
        %v632 = vpop.f32.mrf.mxu0
        %633 = vmatprep.mubr.bf16.mxu0 0
        %634 = vmatmul.mubr.bf16.gmra.mxu0 %v485
        %v635 = vpop.f32.mrf.mxu0
        %v636 = vadd.f32 %v511, %v635
        %v637 = vpop.f32.mrf.mxu0
        %v638 = vpop.f32.mrf.mxu0
        %v639 = vadd.f32 %v511, %v638
        %v640 = vpop.f32.mrf.mxu0
        %641 = vmatprep.mubr.bf16.mxu0 0
        %642 = vmatmul.mubr.bf16.gmra.mxu0 %v486
        %v643 = vpop.f32.mrf.mxu0
        %v644 = vadd.f32 %v511, %v643
        %v645 = vpop.f32.mrf.mxu0
        %v646 = vpop.f32.mrf.mxu0
        %v647 = vadd.f32 %v511, %v646
        %v648 = vpop.f32.mrf.mxu0
        %649 = vmatprep.mubr.bf16.mxu0 0
        %650 = vmatmul.mubr.bf16.gmra.mxu0 %v487
        %v651 = vpop.f32.mrf.mxu0
        %v652 = vadd.f32 %v511, %v651
        %v653 = vpop.f32.mrf.mxu0
        %v654 = vpop.f32.mrf.mxu0
        %v655 = vadd.f32 %v511, %v654
        %v656 = vpop.f32.mrf.mxu0
        %657 = vmatprep.mubr.bf16.mxu0 0
        %658 = vmatmul.mubr.bf16.gmra.mxu0 %v488
        %v659 = vpop.f32.mrf.mxu0
        %v660 = vadd.f32 %v511, %v659
        %v661 = vpop.f32.mrf.mxu0
        %v662 = vpop.f32.mrf.mxu0
        %v663 = vadd.f32 %v511, %v662
        %v664 = vpop.f32.mrf.mxu0
        %665 = vmatprep.mubr.bf16.mxu0 0
        %666 = vmatmul.mubr.bf16.gmra.mxu0 %v489
        %v667 = vpop.f32.mrf.mxu0
        %v668 = vadd.f32 %v511, %v667
        %v669 = vpop.f32.mrf.mxu0
        %v670 = vpop.f32.mrf.mxu0
        %v671 = vadd.f32 %v511, %v670
        %v672 = vpop.f32.mrf.mxu0
        %673 = vdwg.mxu0
        %v674 = vmax.f32 %v596, 0.0
        %v675 = vmax.f32 %v599, 0.0
        %v676 = vmax.f32 %v604, 0.0
        %v677 = vmax.f32 %v607, 0.0
        %v678 = vmax.f32 %v612, 0.0
        %v679 = vmax.f32 %v615, 0.0
        %v680 = vmax.f32 %v620, 0.0
        %v681 = vmax.f32 %v623, 0.0
        %v682 = vmax.f32 %v628, 0.0
        %v683 = vmax.f32 %v631, 0.0
        %v684 = vmax.f32 %v636, 0.0
        %v685 = vmax.f32 %v639, 0.0
        %v686 = vmax.f32 %v644, 0.0
        %v687 = vmax.f32 %v647, 0.0
        %v688 = vmax.f32 %v652, 0.0
        %v689 = vmax.f32 %v655, 0.0
        %v690 = vmax.f32 %v660, 0.0
        %v691 = vmax.f32 %v663, 0.0
        %v692 = vmax.f32 %v668, 0.0
        %v693 = vmax.f32 %v671, 0.0
        %v694 = vlaneseq
        %v695 = vshrl.u32 %v694, 7
        %v696 = vadd.s32 %v695, 8
        %v697 = vadd.s32 %v695, 16
        %v698 = vadd.s32 %v695, 24
        %v699 = vadd.s32 %v695, 32
        %v700 = vadd.s32 %v695, 40
        %v701 = vadd.s32 %v695, 48
        %v702 = vadd.s32 %v695, 56
        %v703 = vadd.s32 %v695, 64
        %v704 = vadd.s32 %v695, 72
        %v705 = vadd.s32 %v695, 80
        %v706 = vadd.s32 %v695, 88
        %v707 = vadd.s32 %v695, 96
        %v708 = vadd.s32 %v695, 104
        %v709 = vadd.s32 %v695, 112
        %v710 = vadd.s32 %v695, 120
        %v711 = vadd.s32 %v695, 128
        %v712 = vadd.s32 %v695, 136
        %v713 = vadd.s32 %v695, 144
        %v714 = vadd.s32 %v695, 152
        %vm715 = vcmp.lt.s32.totalorder %v695, 16
        %vm716 = vcmp.lt.s32.totalorder %v696, 16
        %vm717 = vcmp.lt.s32.totalorder %v697, 16
        %vm718 = vcmp.lt.s32.totalorder %v698, 16
        %vm719 = vcmp.lt.s32.totalorder %v699, 16
        %vm720 = vcmp.lt.s32.totalorder %v700, 16
        %vm721 = vcmp.lt.s32.totalorder %v701, 16
        %vm722 = vcmp.lt.s32.totalorder %v702, 16
        %vm723 = vcmp.lt.s32.totalorder %v703, 16
        %vm724 = vcmp.lt.s32.totalorder %v704, 16
        %vm725 = vcmp.lt.s32.totalorder %v705, 16
        %vm726 = vcmp.lt.s32.totalorder %v706, 16
        %vm727 = vcmp.lt.s32.totalorder %v707, 16
        %vm728 = vcmp.lt.s32.totalorder %v708, 16
        %vm729 = vcmp.lt.s32.totalorder %v709, 16
        %vm730 = vcmp.lt.s32.totalorder %v710, 16
        %vm731 = vcmp.lt.s32.totalorder %v711, 16
        %vm732 = vcmp.lt.s32.totalorder %v712, 16
        %vm733 = vcmp.lt.s32.totalorder %v713, 16
        %vm734 = vcmp.lt.s32.totalorder %v714, 16
        %p735 = scmp.eq.s32.totalorder %s32, 0
        %s736 = scalar_select %p735, 1, 0
        %v737 = vstv %s736
        %vm738 = vcmp.eq.s32.totalorder %v737, 1
        %vm739 = vmand %vm715, %vm738
        %vm740 = vmand %vm716, %vm738
        %vm741 = vmand %vm717, %vm738
        %vm742 = vmand %vm718, %vm738
        %vm743 = vmand %vm719, %vm738
        %vm744 = vmand %vm720, %vm738
        %vm745 = vmand %vm721, %vm738
        %vm746 = vmand %vm722, %vm738
        %vm747 = vmand %vm723, %vm738
        %vm748 = vmand %vm724, %vm738
        %vm749 = vmand %vm725, %vm738
        %vm750 = vmand %vm726, %vm738
        %vm751 = vmand %vm727, %vm738
        %vm752 = vmand %vm728, %vm738
        %vm753 = vmand %vm729, %vm738
        %vm754 = vmand %vm730, %vm738
        %vm755 = vmand %vm731, %vm738
        %vm756 = vmand %vm732, %vm738
        %vm757 = vmand %vm733, %vm738
        %vm758 = vmand %vm734, %vm738
        %vm759 = vcmp.ge.s32.totalorder %v695, 144
        %vm760 = vcmp.ge.s32.totalorder %v696, 144
        %vm761 = vcmp.ge.s32.totalorder %v697, 144
        %vm762 = vcmp.ge.s32.totalorder %v698, 144
        %vm763 = vcmp.ge.s32.totalorder %v699, 144
        %vm764 = vcmp.ge.s32.totalorder %v700, 144
        %vm765 = vcmp.ge.s32.totalorder %v701, 144
        %vm766 = vcmp.ge.s32.totalorder %v702, 144
        %vm767 = vcmp.ge.s32.totalorder %v703, 144
        %vm768 = vcmp.ge.s32.totalorder %v704, 144
        %vm769 = vcmp.ge.s32.totalorder %v705, 144
        %vm770 = vcmp.ge.s32.totalorder %v706, 144
        %vm771 = vcmp.ge.s32.totalorder %v707, 144
        %vm772 = vcmp.ge.s32.totalorder %v708, 144
        %vm773 = vcmp.ge.s32.totalorder %v709, 144
        %vm774 = vcmp.ge.s32.totalorder %v710, 144
        %vm775 = vcmp.ge.s32.totalorder %v711, 144
        %vm776 = vcmp.ge.s32.totalorder %v712, 144
        %vm777 = vcmp.ge.s32.totalorder %v713, 144
        %vm778 = vcmp.ge.s32.totalorder %v714, 144
        %p779 = scmp.eq.s32.totalorder %s32, 1
        %s780 = scalar_select %p779, 1, 0
        %v781 = vstv %s780
        %vm782 = vcmp.eq.s32.totalorder %v781, 1
        %vm783 = vmand %vm759, %vm782
        %vm784 = vmand %vm760, %vm782
        %vm785 = vmand %vm761, %vm782
        %vm786 = vmand %vm762, %vm782
        %vm787 = vmand %vm763, %vm782
        %vm788 = vmand %vm764, %vm782
        %vm789 = vmand %vm765, %vm782
        %vm790 = vmand %vm766, %vm782
        %vm791 = vmand %vm767, %vm782
        %vm792 = vmand %vm768, %vm782
        %vm793 = vmand %vm769, %vm782
        %vm794 = vmand %vm770, %vm782
        %vm795 = vmand %vm771, %vm782
        %vm796 = vmand %vm772, %vm782
        %vm797 = vmand %vm773, %vm782
        %vm798 = vmand %vm774, %vm782
        %vm799 = vmand %vm775, %vm782
        %vm800 = vmand %vm776, %vm782
        %vm801 = vmand %vm777, %vm782
        %vm802 = vmand %vm778, %vm782
        %vm803 = vmor %vm739, %vm783
        %vm804 = vmor %vm740, %vm784
        %vm805 = vmor %vm741, %vm785
        %vm806 = vmor %vm742, %vm786
        %vm807 = vmor %vm743, %vm787
        %vm808 = vmor %vm744, %vm788
        %vm809 = vmor %vm745, %vm789
        %vm810 = vmor %vm746, %vm790
        %vm811 = vmor %vm747, %vm791
        %vm812 = vmor %vm748, %vm792
        %vm813 = vmor %vm749, %vm793
        %vm814 = vmor %vm750, %vm794
        %vm815 = vmor %vm751, %vm795
        %vm816 = vmor %vm752, %vm796
        %vm817 = vmor %vm753, %vm797
        %vm818 = vmor %vm754, %vm798
        %vm819 = vmor %vm755, %vm799
        %vm820 = vmor %vm756, %vm800
        %vm821 = vmor %vm757, %vm801
        %vm822 = vmor %vm758, %vm802
        %v823 = vsel %vm803, 1, 0
        %v824 = vsel %vm804, 1, 0
        %v825 = vsel %vm805, 1, 0
        %v826 = vsel %vm806, 1, 0
        %v827 = vsel %vm807, 1, 0
        %v828 = vsel %vm808, 1, 0
        %v829 = vsel %vm809, 1, 0
        %v830 = vsel %vm810, 1, 0
        %v831 = vsel %vm811, 1, 0
        %v832 = vsel %vm812, 1, 0
        %v833 = vsel %vm813, 1, 0
        %v834 = vsel %vm814, 1, 0
        %v835 = vsel %vm815, 1, 0
        %v836 = vsel %vm816, 1, 0
        %v837 = vsel %vm817, 1, 0
        %v838 = vsel %vm818, 1, 0
        %v839 = vsel %vm819, 1, 0
        %v840 = vsel %vm820, 1, 0
        %v841 = vsel %vm821, 1, 0
        %v842 = vsel %vm822, 1, 0
        %vm843 = vcmp.eq.s32.totalorder %v823, 1
        %vm844 = vcmp.eq.s32.totalorder %v824, 1
        %vm845 = vcmp.eq.s32.totalorder %v825, 1
        %vm846 = vcmp.eq.s32.totalorder %v826, 1
        %vm847 = vcmp.eq.s32.totalorder %v827, 1
        %vm848 = vcmp.eq.s32.totalorder %v828, 1
        %vm849 = vcmp.eq.s32.totalorder %v829, 1
        %vm850 = vcmp.eq.s32.totalorder %v830, 1
        %vm851 = vcmp.eq.s32.totalorder %v831, 1
        %vm852 = vcmp.eq.s32.totalorder %v832, 1
        %vm853 = vcmp.eq.s32.totalorder %v833, 1
        %vm854 = vcmp.eq.s32.totalorder %v834, 1
        %vm855 = vcmp.eq.s32.totalorder %v835, 1
        %vm856 = vcmp.eq.s32.totalorder %v836, 1
        %vm857 = vcmp.eq.s32.totalorder %v837, 1
        %vm858 = vcmp.eq.s32.totalorder %v838, 1
        %vm859 = vcmp.eq.s32.totalorder %v839, 1
        %vm860 = vcmp.eq.s32.totalorder %v840, 1
        %vm861 = vcmp.eq.s32.totalorder %v841, 1
        %vm862 = vcmp.eq.s32.totalorder %v842, 1
        %v863 = vsel %vm843, 0.0, %v674
        %v864 = vsel %vm844, 0.0, %v675
        %v865 = vsel %vm845, 0.0, %v676
        %v866 = vsel %vm846, 0.0, %v677
        %v867 = vsel %vm847, 0.0, %v678
        %v868 = vsel %vm848, 0.0, %v679
        %v869 = vsel %vm849, 0.0, %v680
        %v870 = vsel %vm850, 0.0, %v681
        %v871 = vsel %vm851, 0.0, %v682
        %v872 = vsel %vm852, 0.0, %v683
        %v873 = vsel %vm853, 0.0, %v684
        %v874 = vsel %vm854, 0.0, %v685
        %v875 = vsel %vm855, 0.0, %v686
        %v876 = vsel %vm856, 0.0, %v687
        %v877 = vsel %vm857, 0.0, %v688
        %v878 = vsel %vm858, 0.0, %v689
        %v879 = vsel %vm859, 0.0, %v690
        %v880 = vsel %vm860, 0.0, %v691
        %v881 = vsel %vm861, 0.0, %v692
        %v882 = vsel %vm862, 0.0, %v693
        %v883 = vpack.c.bf16 %v864, %v863
        %v884 = vpack.c.bf16 %v866, %v865
        %v885 = vpack.c.bf16 %v868, %v867
        %v886 = vpack.c.bf16 %v870, %v869
        %v887 = vpack.c.bf16 %v872, %v871
        %v888 = vpack.c.bf16 %v874, %v873
        %v889 = vpack.c.bf16 %v876, %v875
        %v890 = vpack.c.bf16 %v878, %v877
        %v891 = vpack.c.bf16 %v880, %v879
        %v892 = vpack.c.bf16 %v882, %v881
        %v893 = vld [vmem:[#allocation7] sm:$0xff]
        %v894 = vld [vmem:[#allocation7 + $0x8] sm:$0xff]
        %v895 = vld [vmem:[#allocation7 + $0x10] sm:$0xff]
        %v896 = vld [vmem:[#allocation7 + $0x18] sm:$0xff]
        %v897 = vld [vmem:[#allocation7 + $0x20] sm:$0xf]
        %v898 = vld [vmem:[#allocation7 + $0x24] sm:$0xff]
        %v899 = vld [vmem:[#allocation7 + $0x2c] sm:$0xff]
        %v900 = vld [vmem:[#allocation7 + $0x34] sm:$0xff]
        %v901 = vld [vmem:[#allocation7 + $0x3c] sm:$0xff]
        %v902 = vld [vmem:[#allocation7 + $0x44] sm:$0xf]
        %v903 = vld [vmem:[#allocation7 + $0x48] sm:$0xff]
        %v904 = vld [vmem:[#allocation7 + $0x50] sm:$0xff]
        %v905 = vld [vmem:[#allocation7 + $0x58] sm:$0xff]
        %v906 = vld [vmem:[#allocation7 + $0x60] sm:$0xff]
        %v907 = vld [vmem:[#allocation7 + $0x68] sm:$0xf]
        %v908 = vld [vmem:[#allocation7 + $0x6c] sm:$0xff]
        %v909 = vld [vmem:[#allocation7 + $0x74] sm:$0xff]
        %v910 = vld [vmem:[#allocation7 + $0x7c] sm:$0xff]
        %v911 = vld [vmem:[#allocation7 + $0x84] sm:$0xff]
        %v912 = vld [vmem:[#allocation7 + $0x8c] sm:$0xf]
        %v913 = vld [vmem:[#allocation7 + $0x90] sm:$0xff]
        %v914 = vld [vmem:[#allocation7 + $0x98] sm:$0xff]
        %v915 = vld [vmem:[#allocation7 + $0xa0] sm:$0xff]
        %v916 = vld [vmem:[#allocation7 + $0xa8] sm:$0xff]
        %v917 = vld [vmem:[#allocation7 + $0xb0] sm:$0xf]
        %v918 = vld [vmem:[#allocation7 + $0xb4] sm:$0xff]
        %v919 = vld [vmem:[#allocation7 + $0xbc] sm:$0xff]
        %v920 = vld [vmem:[#allocation7 + $0xc4] sm:$0xff]
        %v921 = vld [vmem:[#allocation7 + $0xcc] sm:$0xff]
        %v922 = vld [vmem:[#allocation7 + $0xd4] sm:$0xf]
        %v923 = vld [vmem:[#allocation7 + $0xd8] sm:$0xff]
        %v924 = vld [vmem:[#allocation7 + $0xe0] sm:$0xff]
        %v925 = vld [vmem:[#allocation7 + $0xe8] sm:$0xff]
        %v926 = vld [vmem:[#allocation7 + $0xf0] sm:$0xff]
        %v927 = vld [vmem:[#allocation7 + $0xf8] sm:$0xf]
        %v928 = vld [vmem:[#allocation7 + $0xfc] sm:$0xff]
        %v929 = vld [vmem:[#allocation7 + $0x104] sm:$0xff]
        %v930 = vld [vmem:[#allocation7 + $0x10c] sm:$0xff]
        %v931 = vld [vmem:[#allocation7 + $0x114] sm:$0xff]
        %v932 = vld [vmem:[#allocation7 + $0x11c] sm:$0xf]
        %v933 = vld [vmem:[#allocation7 + $0x120] sm:$0xff]
        %v934 = vld [vmem:[#allocation7 + $0x128] sm:$0xff]
        %v935 = vld [vmem:[#allocation7 + $0x130] sm:$0xff]
        %v936 = vld [vmem:[#allocation7 + $0x138] sm:$0xff]
        %v937 = vld [vmem:[#allocation7 + $0x140] sm:$0xf]
        %v938 = vld [vmem:[#allocation7 + $0x144] sm:$0xff]
        %v939 = vld [vmem:[#allocation7 + $0x14c] sm:$0xff]
        %v940 = vld [vmem:[#allocation7 + $0x154] sm:$0xff]
        %v941 = vld [vmem:[#allocation7 + $0x15c] sm:$0xff]
        %v942 = vld [vmem:[#allocation7 + $0x164] sm:$0xf]
        %v943 = vld [vmem:[#allocation7 + $0x168] sm:$0xff]
        %v944 = vld [vmem:[#allocation7 + $0x170] sm:$0xff]
        %v945 = vld [vmem:[#allocation7 + $0x178] sm:$0xff]
        %v946 = vld [vmem:[#allocation7 + $0x180] sm:$0xff]
        %v947 = vld [vmem:[#allocation7 + $0x188] sm:$0xf]
        %v948 = vld [vmem:[#allocation7 + $0x18c] sm:$0xff]
        %v949 = vld [vmem:[#allocation7 + $0x194] sm:$0xff]
        %v950 = vld [vmem:[#allocation7 + $0x19c] sm:$0xff]
        %v951 = vld [vmem:[#allocation7 + $0x1a4] sm:$0xff]
        %v952 = vld [vmem:[#allocation7 + $0x1ac] sm:$0xf]
        %v953 = vld [vmem:[#allocation7 + $0x1b0] sm:$0xff]
        %v954 = vld [vmem:[#allocation7 + $0x1b8] sm:$0xff]
        %v955 = vld [vmem:[#allocation7 + $0x1c0] sm:$0xff]
        %v956 = vld [vmem:[#allocation7 + $0x1c8] sm:$0xff]
        %v957 = vld [vmem:[#allocation7 + $0x1d0] sm:$0xf]
        %v958 = vld [vmem:[#allocation7 + $0x1d4] sm:$0xff]
        %v959 = vld [vmem:[#allocation7 + $0x1dc] sm:$0xff]
        %v960 = vld [vmem:[#allocation7 + $0x1e4] sm:$0xff]
        %v961 = vld [vmem:[#allocation7 + $0x1ec] sm:$0xff]
        %v962 = vld [vmem:[#allocation7 + $0x1f4] sm:$0xf]
        %v963 = vld [vmem:[#allocation7 + $0x1f8] sm:$0xff]
        %v964 = vld [vmem:[#allocation7 + $0x200] sm:$0xff]
        %v965 = vld [vmem:[#allocation7 + $0x208] sm:$0xff]
        %v966 = vld [vmem:[#allocation7 + $0x210] sm:$0xff]
        %v967 = vld [vmem:[#allocation7 + $0x218] sm:$0xf]
        %v968 = vld [vmem:[#allocation7 + $0x21c] sm:$0xff]
        %v969 = vld [vmem:[#allocation7 + $0x224] sm:$0xff]
        %v970 = vld [vmem:[#allocation7 + $0x22c] sm:$0xff]
        %v971 = vld [vmem:[#allocation7 + $0x234] sm:$0xff]
        %v972 = vld [vmem:[#allocation7 + $0x23c] sm:$0xf]
        %v1053 = vunpack.c.l.b16 %v893
        %v1054 = vunpack.c.h.b16 %v893
        %v1055 = vunpack.c.l.b16 %v894
        %v1056 = vunpack.c.h.b16 %v894
        %v1057 = vunpack.c.l.b16 %v895
        %v1058 = vunpack.c.h.b16 %v895
        %v1059 = vunpack.c.l.b16 %v896
        %v1060 = vunpack.c.h.b16 %v896
        %v1061 = vunpack.c.l.b16 %v897
        %v1062 = vunpack.c.l.b16 %v898
        %v1063 = vunpack.c.h.b16 %v898
        %v1064 = vunpack.c.l.b16 %v899
        %v1065 = vunpack.c.h.b16 %v899
        %v1066 = vunpack.c.l.b16 %v900
        %v1067 = vunpack.c.h.b16 %v900
        %v1068 = vunpack.c.l.b16 %v901
        %v1069 = vunpack.c.h.b16 %v901
        %v1070 = vunpack.c.l.b16 %v902
        %v1071 = vunpack.c.l.b16 %v903
        %v1072 = vunpack.c.h.b16 %v903
        %v1073 = vunpack.c.l.b16 %v904
        %v1074 = vunpack.c.h.b16 %v904
        %v1075 = vunpack.c.l.b16 %v905
        %v1076 = vunpack.c.h.b16 %v905
        %v1077 = vunpack.c.l.b16 %v906
        %v1078 = vunpack.c.h.b16 %v906
        %v1079 = vunpack.c.l.b16 %v907
        %v1080 = vunpack.c.l.b16 %v908
        %v1081 = vunpack.c.h.b16 %v908
        %v1082 = vunpack.c.l.b16 %v909
        %v1083 = vunpack.c.h.b16 %v909
        %v1084 = vunpack.c.l.b16 %v910
        %v1085 = vunpack.c.h.b16 %v910
        %v1086 = vunpack.c.l.b16 %v911
        %v1087 = vunpack.c.h.b16 %v911
        %v1088 = vunpack.c.l.b16 %v912
        %v1089 = vunpack.c.l.b16 %v913
        %v1090 = vunpack.c.h.b16 %v913
        %v1091 = vunpack.c.l.b16 %v914
        %v1092 = vunpack.c.h.b16 %v914
        %v1093 = vunpack.c.l.b16 %v915
        %v1094 = vunpack.c.h.b16 %v915
        %v1095 = vunpack.c.l.b16 %v916
        %v1096 = vunpack.c.h.b16 %v916
        %v1097 = vunpack.c.l.b16 %v917
        %v1098 = vunpack.c.l.b16 %v918
        %v1099 = vunpack.c.h.b16 %v918
        %v1100 = vunpack.c.l.b16 %v919
        %v1101 = vunpack.c.h.b16 %v919
        %v1102 = vunpack.c.l.b16 %v920
        %v1103 = vunpack.c.h.b16 %v920
        %v1104 = vunpack.c.l.b16 %v921
        %v1105 = vunpack.c.h.b16 %v921
        %v1106 = vunpack.c.l.b16 %v922
        %v1107 = vunpack.c.l.b16 %v923
        %v1108 = vunpack.c.h.b16 %v923
        %v1109 = vunpack.c.l.b16 %v924
        %v1110 = vunpack.c.h.b16 %v924
        %v1111 = vunpack.c.l.b16 %v925
        %v1112 = vunpack.c.h.b16 %v925
        %v1113 = vunpack.c.l.b16 %v926
        %v1114 = vunpack.c.h.b16 %v926
        %v1115 = vunpack.c.l.b16 %v927
        %v1116 = vunpack.c.l.b16 %v928
        %v1117 = vunpack.c.h.b16 %v928
        %v1118 = vunpack.c.l.b16 %v929
        %v1119 = vunpack.c.h.b16 %v929
        %v1120 = vunpack.c.l.b16 %v930
        %v1121 = vunpack.c.h.b16 %v930
        %v1122 = vunpack.c.l.b16 %v931
        %v1123 = vunpack.c.h.b16 %v931
        %v1124 = vunpack.c.l.b16 %v932
        %v1125 = vunpack.c.l.b16 %v933
        %v1126 = vunpack.c.h.b16 %v933
        %v1127 = vunpack.c.l.b16 %v934
        %v1128 = vunpack.c.h.b16 %v934
        %v1129 = vunpack.c.l.b16 %v935
        %v1130 = vunpack.c.h.b16 %v935
        %v1131 = vunpack.c.l.b16 %v936
        %v1132 = vunpack.c.h.b16 %v936
        %v1133 = vunpack.c.l.b16 %v937
        %v1134 = vunpack.c.l.b16 %v938
        %v1135 = vunpack.c.h.b16 %v938
        %v1136 = vunpack.c.l.b16 %v939
        %v1137 = vunpack.c.h.b16 %v939
        %v1138 = vunpack.c.l.b16 %v940
        %v1139 = vunpack.c.h.b16 %v940
        %v1140 = vunpack.c.l.b16 %v941
        %v1141 = vunpack.c.h.b16 %v941
        %v1142 = vunpack.c.l.b16 %v942
        %v1143 = vunpack.c.l.b16 %v943
        %v1144 = vunpack.c.h.b16 %v943
        %v1145 = vunpack.c.l.b16 %v944
        %v1146 = vunpack.c.h.b16 %v944
        %v1147 = vunpack.c.l.b16 %v945
        %v1148 = vunpack.c.h.b16 %v945
        %v1149 = vunpack.c.l.b16 %v946
        %v1150 = vunpack.c.h.b16 %v946
        %v1151 = vunpack.c.l.b16 %v947
        %v1152 = vunpack.c.l.b16 %v948
        %v1153 = vunpack.c.h.b16 %v948
        %v1154 = vunpack.c.l.b16 %v949
        %v1155 = vunpack.c.h.b16 %v949
        %v1156 = vunpack.c.l.b16 %v950
        %v1157 = vunpack.c.h.b16 %v950
        %v1158 = vunpack.c.l.b16 %v951
        %v1159 = vunpack.c.h.b16 %v951
        %v1160 = vunpack.c.l.b16 %v952
        %v1161 = vunpack.c.l.b16 %v953
        %v1162 = vunpack.c.h.b16 %v953
        %v1163 = vunpack.c.l.b16 %v954
        %v1164 = vunpack.c.h.b16 %v954
        %v1165 = vunpack.c.l.b16 %v955
        %v1166 = vunpack.c.h.b16 %v955
        %v1167 = vunpack.c.l.b16 %v956
        %v1168 = vunpack.c.h.b16 %v956
        %v1169 = vunpack.c.l.b16 %v957
        %v1170 = vunpack.c.l.b16 %v958
        %v1171 = vunpack.c.h.b16 %v958
        %v1172 = vunpack.c.l.b16 %v959
        %v1173 = vunpack.c.h.b16 %v959
        %v1174 = vunpack.c.l.b16 %v960
        %v1175 = vunpack.c.h.b16 %v960
        %v1176 = vunpack.c.l.b16 %v961
        %v1177 = vunpack.c.h.b16 %v961
        %v1178 = vunpack.c.l.b16 %v962
        %v1179 = vunpack.c.l.b16 %v963
        %v1180 = vunpack.c.h.b16 %v963
        %v1181 = vunpack.c.l.b16 %v964
        %v1182 = vunpack.c.h.b16 %v964
        %v1183 = vunpack.c.l.b16 %v965
        %v1184 = vunpack.c.h.b16 %v965
        %v1185 = vunpack.c.l.b16 %v966
        %v1186 = vunpack.c.h.b16 %v966
        %v1187 = vunpack.c.l.b16 %v967
        %v1188 = vunpack.c.l.b16 %v968
        %v1189 = vunpack.c.h.b16 %v968
        %v1190 = vunpack.c.l.b16 %v969
        %v1191 = vunpack.c.h.b16 %v969
        %v1192 = vunpack.c.l.b16 %v970
        %v1193 = vunpack.c.h.b16 %v970
        %v1194 = vunpack.c.l.b16 %v971
        %v1195 = vunpack.c.h.b16 %v971
        %v1196 = vunpack.c.l.b16 %v972
        %v1197 = vpack.c.b16 %v1062, %v1053
        %v1198 = vpack.c.b16 %v1063, %v1054
        %v1199 = vpack.c.b16 %v1064, %v1055
        %v1200 = vpack.c.b16 %v1065, %v1056
        %v1201 = vpack.c.b16 %v1066, %v1057
        %v1202 = vpack.c.b16 %v1067, %v1058
        %v1203 = vpack.c.b16 %v1068, %v1059
        %v1204 = vpack.c.b16 %v1069, %v1060
        %v1205 = vpack.c.b16 %v1070, %v1061
        %v1206 = vpack.c.b16 %v1080, %v1071
        %v1207 = vpack.c.b16 %v1081, %v1072
        %v1208 = vpack.c.b16 %v1082, %v1073
        %v1209 = vpack.c.b16 %v1083, %v1074
        %v1210 = vpack.c.b16 %v1084, %v1075
        %v1211 = vpack.c.b16 %v1085, %v1076
        %v1212 = vpack.c.b16 %v1086, %v1077
        %v1213 = vpack.c.b16 %v1087, %v1078
        %v1214 = vpack.c.b16 %v1088, %v1079
        %v1215 = vpack.c.b16 %v1098, %v1089
        %v1216 = vpack.c.b16 %v1099, %v1090
        %v1217 = vpack.c.b16 %v1100, %v1091
        %v1218 = vpack.c.b16 %v1101, %v1092
        %v1219 = vpack.c.b16 %v1102, %v1093
        %v1220 = vpack.c.b16 %v1103, %v1094
        %v1221 = vpack.c.b16 %v1104, %v1095
        %v1222 = vpack.c.b16 %v1105, %v1096
        %v1223 = vpack.c.b16 %v1106, %v1097
        %v1224 = vpack.c.b16 %v1116, %v1107
        %v1225 = vpack.c.b16 %v1117, %v1108
        %v1226 = vpack.c.b16 %v1118, %v1109
        %v1227 = vpack.c.b16 %v1119, %v1110
        %v1228 = vpack.c.b16 %v1120, %v1111
        %v1229 = vpack.c.b16 %v1121, %v1112
        %v1230 = vpack.c.b16 %v1122, %v1113
        %v1231 = vpack.c.b16 %v1123, %v1114
        %v1232 = vpack.c.b16 %v1124, %v1115
        %v1233 = vpack.c.b16 %v1134, %v1125
        %v1234 = vpack.c.b16 %v1135, %v1126
        %v1235 = vpack.c.b16 %v1136, %v1127
        %v1236 = vpack.c.b16 %v1137, %v1128
        %v1237 = vpack.c.b16 %v1138, %v1129
        %v1238 = vpack.c.b16 %v1139, %v1130
        %v1239 = vpack.c.b16 %v1140, %v1131
        %v1240 = vpack.c.b16 %v1141, %v1132
        %v1241 = vpack.c.b16 %v1142, %v1133
        %v1242 = vpack.c.b16 %v1152, %v1143
        %v1243 = vpack.c.b16 %v1153, %v1144
        %v1244 = vpack.c.b16 %v1154, %v1145
        %v1245 = vpack.c.b16 %v1155, %v1146
        %v1246 = vpack.c.b16 %v1156, %v1147
        %v1247 = vpack.c.b16 %v1157, %v1148
        %v1248 = vpack.c.b16 %v1158, %v1149
        %v1249 = vpack.c.b16 %v1159, %v1150
        %v1250 = vpack.c.b16 %v1160, %v1151
        %v1251 = vpack.c.b16 %v1170, %v1161
        %v1252 = vpack.c.b16 %v1171, %v1162
        %v1253 = vpack.c.b16 %v1172, %v1163
        %v1254 = vpack.c.b16 %v1173, %v1164
        %v1255 = vpack.c.b16 %v1174, %v1165
        %v1256 = vpack.c.b16 %v1175, %v1166
        %v1257 = vpack.c.b16 %v1176, %v1167
        %v1258 = vpack.c.b16 %v1177, %v1168
        %v1259 = vpack.c.b16 %v1178, %v1169
        %v1260 = vpack.c.b16 %v1188, %v1179
        %v1261 = vpack.c.b16 %v1189, %v1180
        %v1262 = vpack.c.b16 %v1190, %v1181
        %v1263 = vpack.c.b16 %v1191, %v1182
        %v1264 = vpack.c.b16 %v1192, %v1183
        %v1265 = vpack.c.b16 %v1193, %v1184
        %v1266 = vpack.c.b16 %v1194, %v1185
        %v1267 = vpack.c.b16 %v1195, %v1186
        %v1268 = vpack.c.b16 %v1196, %v1187
        %1341 = vmatprep.subr.bf16.mxu0 %v1261
        %1342 = vmatpush1.bf16.msra.mxu0 %v1260
        %1343 = vmatprep.subr.bf16.mxu0 %v1252
        %1344 = vmatpush1.bf16.msra.mxu0 %v1251
        %1345 = vmatprep.subr.bf16.mxu0 %v1243
        %1346 = vmatpush1.bf16.msra.mxu0 %v1242
        %1347 = vmatprep.subr.bf16.mxu0 %v1234
        %1348 = vmatpush1.bf16.msra.mxu0 %v1233
        %1349 = vmatprep.subr.bf16.mxu0 %v1225
        %1350 = vmatpush1.bf16.msra.mxu0 %v1224
        %1351 = vmatprep.subr.bf16.mxu0 %v1216
        %1352 = vmatpush1.bf16.msra.mxu0 %v1215
        %1353 = vmatprep.subr.bf16.mxu0 %v1207
        %1354 = vmatpush1.bf16.msra.mxu0 %v1206
        %1355 = vmatprep.subr.bf16.mxu0 %v1198
        %1356 = vmatpush1.bf16.msra.mxu0 %v1197
        %1357 = vmatprep.subr.bf16.mxu0 0
        %1358 = vmatpush2.bf16.msra.mxu0 0
        %1359 = vmatprep.subr.bf16.mxu0 0
        %1360 = vmatpush2.bf16.msra.mxu0 0
        %1361 = vmatprep.subr.bf16.mxu0 0
        %1362 = vmatpush2.bf16.msra.mxu0 0
        %1363 = vmatprep.subr.bf16.mxu0 0
        %1364 = vmatpush2.bf16.msra.mxu0 0
        %1365 = vmatprep.subr.bf16.mxu0 0
        %1366 = vmatpush2.bf16.msra.mxu0 0
        %1367 = vmatprep.subr.bf16.mxu0 0
        %1368 = vmatpush2.bf16.msra.mxu0 0
        %1369 = vmatprep.subr.bf16.mxu0 0
        %1370 = vmatpush2.bf16.msra.mxu0 0
        %1371 = vmatprep.subr.bf16.mxu0 0
        %1372 = vmatpush2.bf16.msra.mxu0 0
        %1373 = vmatprep.mubr.bf16.mxu0 0
        %1374 = vmatmul.mubr.bf16.gmra.mxu0 %v883
        %v1375 = vpop.f32.mrf.mxu0
        %v1376 = vadd.f32 0.0, %v1375
        %v1377 = vpop.f32.mrf.mxu0
        %v1378 = vadd.f32 0.0, %v1377
        %v1379 = vpop.f32.mrf.mxu0
        %v1380 = vadd.f32 0.0, %v1379
        %v1381 = vpop.f32.mrf.mxu0
        %v1382 = vadd.f32 0.0, %v1381
        %1383 = vmatprep.mubr.bf16.mxu0 0
        %1384 = vmatmul.mubr.bf16.gmra.mxu0 %v884
        %v1385 = vpop.f32.mrf.mxu0
        %v1386 = vadd.f32 0.0, %v1385
        %v1387 = vpop.f32.mrf.mxu0
        %v1388 = vadd.f32 0.0, %v1387
        %v1389 = vpop.f32.mrf.mxu0
        %v1390 = vadd.f32 0.0, %v1389
        %v1391 = vpop.f32.mrf.mxu0
        %v1392 = vadd.f32 0.0, %v1391
        %1393 = vmatprep.mubr.bf16.mxu0 0
        %1394 = vmatmul.mubr.bf16.gmra.mxu0 %v885
        %v1395 = vpop.f32.mrf.mxu0
        %v1396 = vadd.f32 0.0, %v1395
        %v1397 = vpop.f32.mrf.mxu0
        %v1398 = vadd.f32 0.0, %v1397
        %v1399 = vpop.f32.mrf.mxu0
        %v1400 = vadd.f32 0.0, %v1399
        %v1401 = vpop.f32.mrf.mxu0
        %v1402 = vadd.f32 0.0, %v1401
        %1403 = vmatprep.mubr.bf16.mxu0 0
        %1404 = vmatmul.mubr.bf16.gmra.mxu0 %v886
        %v1405 = vpop.f32.mrf.mxu0
        %v1406 = vadd.f32 0.0, %v1405
        %v1407 = vpop.f32.mrf.mxu0
        %v1408 = vadd.f32 0.0, %v1407
        %v1409 = vpop.f32.mrf.mxu0
        %v1410 = vadd.f32 0.0, %v1409
        %v1411 = vpop.f32.mrf.mxu0
        %v1412 = vadd.f32 0.0, %v1411
        %1413 = vmatprep.mubr.bf16.mxu0 0
        %1414 = vmatmul.mubr.bf16.gmra.mxu0 %v887
        %v1415 = vpop.f32.mrf.mxu0
        %v1416 = vadd.f32 0.0, %v1415
        %v1417 = vpop.f32.mrf.mxu0
        %v1418 = vadd.f32 0.0, %v1417
        %v1419 = vpop.f32.mrf.mxu0
        %v1420 = vadd.f32 0.0, %v1419
        %v1421 = vpop.f32.mrf.mxu0
        %v1422 = vadd.f32 0.0, %v1421
        %1423 = vmatprep.mubr.bf16.mxu0 0
        %1424 = vmatmul.mubr.bf16.gmra.mxu0 %v888
        %v1425 = vpop.f32.mrf.mxu0
        %v1426 = vadd.f32 0.0, %v1425
        %v1427 = vpop.f32.mrf.mxu0
        %v1428 = vadd.f32 0.0, %v1427
        %v1429 = vpop.f32.mrf.mxu0
        %v1430 = vadd.f32 0.0, %v1429
        %v1431 = vpop.f32.mrf.mxu0
        %v1432 = vadd.f32 0.0, %v1431
        %1433 = vmatprep.mubr.bf16.mxu0 0
        %1434 = vmatmul.mubr.bf16.gmra.mxu0 %v889
        %v1435 = vpop.f32.mrf.mxu0
        %v1436 = vadd.f32 0.0, %v1435
        %v1437 = vpop.f32.mrf.mxu0
        %v1438 = vadd.f32 0.0, %v1437
        %v1439 = vpop.f32.mrf.mxu0
        %v1440 = vadd.f32 0.0, %v1439
        %v1441 = vpop.f32.mrf.mxu0
        %v1442 = vadd.f32 0.0, %v1441
        %1443 = vmatprep.mubr.bf16.mxu0 0
        %1444 = vmatmul.mubr.bf16.gmra.mxu0 %v890
        %v1445 = vpop.f32.mrf.mxu0
        %v1446 = vadd.f32 0.0, %v1445
        %v1447 = vpop.f32.mrf.mxu0
        %v1448 = vadd.f32 0.0, %v1447
        %v1449 = vpop.f32.mrf.mxu0
        %v1450 = vadd.f32 0.0, %v1449
        %v1451 = vpop.f32.mrf.mxu0
        %v1452 = vadd.f32 0.0, %v1451
        %1453 = vmatprep.mubr.bf16.mxu0 0
        %1454 = vmatmul.mubr.bf16.gmra.mxu0 %v891
        %v1455 = vpop.f32.mrf.mxu0
        %v1456 = vpop.f32.mrf.mxu0
        %v1457 = vpop.f32.mrf.mxu0
        %v1458 = vpop.f32.mrf.mxu0
        %1459 = vmatprep.mubr.bf16.mxu0 0
        %1460 = vmatmul.mubr.bf16.gmra.mxu0 %v892
        %v1461 = vpop.f32.mrf.mxu0
        %v1462 = vpop.f32.mrf.mxu0
        %v1463 = vpop.f32.mrf.mxu0
        %v1464 = vpop.f32.mrf.mxu0
        %1465 = vdwg.mxu0
        %1466 = vmatprep.subr.bf16.mxu0 %v1263
        %1467 = vmatpush1.bf16.msra.mxu0 %v1262
        %1468 = vmatprep.subr.bf16.mxu0 %v1254
        %1469 = vmatpush1.bf16.msra.mxu0 %v1253
        %1470 = vmatprep.subr.bf16.mxu0 %v1245
        %1471 = vmatpush1.bf16.msra.mxu0 %v1244
        %1472 = vmatprep.subr.bf16.mxu0 %v1236
        %1473 = vmatpush1.bf16.msra.mxu0 %v1235
        %1474 = vmatprep.subr.bf16.mxu0 %v1227
        %1475 = vmatpush1.bf16.msra.mxu0 %v1226
        %1476 = vmatprep.subr.bf16.mxu0 %v1218
        %1477 = vmatpush1.bf16.msra.mxu0 %v1217
        %1478 = vmatprep.subr.bf16.mxu0 %v1209
        %1479 = vmatpush1.bf16.msra.mxu0 %v1208
        %1480 = vmatprep.subr.bf16.mxu0 %v1200
        %1481 = vmatpush1.bf16.msra.mxu0 %v1199
        %1482 = vmatprep.subr.bf16.mxu0 0
        %1483 = vmatpush2.bf16.msra.mxu0 0
        %1484 = vmatprep.subr.bf16.mxu0 0
        %1485 = vmatpush2.bf16.msra.mxu0 0
        %1486 = vmatprep.subr.bf16.mxu0 0
        %1487 = vmatpush2.bf16.msra.mxu0 0
        %1488 = vmatprep.subr.bf16.mxu0 0
        %1489 = vmatpush2.bf16.msra.mxu0 0
        %1490 = vmatprep.subr.bf16.mxu0 0
        %1491 = vmatpush2.bf16.msra.mxu0 0
        %1492 = vmatprep.subr.bf16.mxu0 0
        %1493 = vmatpush2.bf16.msra.mxu0 0
        %1494 = vmatprep.subr.bf16.mxu0 0
        %1495 = vmatpush2.bf16.msra.mxu0 0
        %1496 = vmatprep.subr.bf16.mxu0 0
        %1497 = vmatpush2.bf16.msra.mxu0 0
        %1498 = vmatprep.mubr.bf16.mxu0 0
        %1499 = vmatmul.mubr.bf16.gmra.mxu0 %v883
        %v1500 = vpop.f32.mrf.mxu0
        %v1501 = vadd.f32 0.0, %v1500
        %v1502 = vpop.f32.mrf.mxu0
        %v1503 = vpop.f32.mrf.mxu0
        %v1504 = vadd.f32 0.0, %v1503
        %v1505 = vpop.f32.mrf.mxu0
        %1506 = vmatprep.mubr.bf16.mxu0 0
        %1507 = vmatmul.mubr.bf16.gmra.mxu0 %v884
        %v1508 = vpop.f32.mrf.mxu0
        %v1509 = vadd.f32 0.0, %v1508
        %v1510 = vpop.f32.mrf.mxu0
        %v1511 = vadd.f32 0.0, %v1510
        %v1512 = vpop.f32.mrf.mxu0
        %v1513 = vadd.f32 0.0, %v1512
        %v1514 = vpop.f32.mrf.mxu0
        %v1515 = vadd.f32 0.0, %v1514
        %1516 = vmatprep.mubr.bf16.mxu0 0
        %1517 = vmatmul.mubr.bf16.gmra.mxu0 %v885
        %v1518 = vpop.f32.mrf.mxu0
        %v1519 = vadd.f32 0.0, %v1518
        %v1520 = vpop.f32.mrf.mxu0
        %v1521 = vadd.f32 0.0, %v1520
        %v1522 = vpop.f32.mrf.mxu0
        %v1523 = vadd.f32 0.0, %v1522
        %v1524 = vpop.f32.mrf.mxu0
        %v1525 = vadd.f32 0.0, %v1524
        %1526 = vmatprep.mubr.bf16.mxu0 0
        %1527 = vmatmul.mubr.bf16.gmra.mxu0 %v886
        %v1528 = vpop.f32.mrf.mxu0
        %v1529 = vadd.f32 0.0, %v1528
        %v1530 = vpop.f32.mrf.mxu0
        %v1531 = vadd.f32 0.0, %v1530
        %v1532 = vpop.f32.mrf.mxu0
        %v1533 = vadd.f32 0.0, %v1532
        %v1534 = vpop.f32.mrf.mxu0
        %v1535 = vadd.f32 0.0, %v1534
        %1536 = vmatprep.mubr.bf16.mxu0 0
        %1537 = vmatmul.mubr.bf16.gmra.mxu0 %v887
        %v1538 = vpop.f32.mrf.mxu0
        %v1539 = vadd.f32 0.0, %v1538
        %v1540 = vpop.f32.mrf.mxu0
        %v1541 = vadd.f32 0.0, %v1540
        %v1542 = vpop.f32.mrf.mxu0
        %v1543 = vadd.f32 0.0, %v1542
        %v1544 = vpop.f32.mrf.mxu0
        %v1545 = vadd.f32 0.0, %v1544
        %1546 = vmatprep.mubr.bf16.mxu0 0
        %1547 = vmatmul.mubr.bf16.gmra.mxu0 %v888
        %v1548 = vpop.f32.mrf.mxu0
        %v1549 = vadd.f32 0.0, %v1548
        %v1550 = vpop.f32.mrf.mxu0
        %v1551 = vadd.f32 0.0, %v1550
        %v1552 = vpop.f32.mrf.mxu0
        %v1553 = vadd.f32 0.0, %v1552
        %v1554 = vpop.f32.mrf.mxu0
        %v1555 = vadd.f32 0.0, %v1554
        %1556 = vmatprep.mubr.bf16.mxu0 0
        %1557 = vmatmul.mubr.bf16.gmra.mxu0 %v889
        %v1558 = vpop.f32.mrf.mxu0
        %v1559 = vadd.f32 0.0, %v1558
        %v1560 = vpop.f32.mrf.mxu0
        %v1561 = vadd.f32 0.0, %v1560
        %v1562 = vpop.f32.mrf.mxu0
        %v1563 = vadd.f32 0.0, %v1562
        %v1564 = vpop.f32.mrf.mxu0
        %v1565 = vadd.f32 0.0, %v1564
        %1566 = vmatprep.mubr.bf16.mxu0 0
        %1567 = vmatmul.mubr.bf16.gmra.mxu0 %v890
        %v1568 = vpop.f32.mrf.mxu0
        %v1569 = vadd.f32 0.0, %v1568
        %v1570 = vpop.f32.mrf.mxu0
        %v1571 = vadd.f32 0.0, %v1570
        %v1572 = vpop.f32.mrf.mxu0
        %v1573 = vadd.f32 0.0, %v1572
        %v1574 = vpop.f32.mrf.mxu0
        %v1575 = vadd.f32 0.0, %v1574
        %1576 = vmatprep.mubr.bf16.mxu0 0
        %1577 = vmatmul.mubr.bf16.gmra.mxu0 %v891
        %v1578 = vpop.f32.mrf.mxu0
        %v1579 = vpop.f32.mrf.mxu0
        %v1580 = vadd.f32 0.0, %v1579
        %v1581 = vpop.f32.mrf.mxu0
        %v1582 = vpop.f32.mrf.mxu0
        %v1583 = vadd.f32 0.0, %v1582
        %1584 = vmatprep.mubr.bf16.mxu0 0
        %1585 = vmatmul.mubr.bf16.gmra.mxu0 %v892
        %v1586 = vpop.f32.mrf.mxu0
        %v1587 = vpop.f32.mrf.mxu0
        %v1588 = vpop.f32.mrf.mxu0
        %v1589 = vpop.f32.mrf.mxu0
        %1590 = vdwg.mxu0
        %1591 = vmatprep.subr.bf16.mxu0 %v1265
        %1592 = vmatpush1.bf16.msra.mxu0 %v1264
        %1593 = vmatprep.subr.bf16.mxu0 %v1256
        %1594 = vmatpush1.bf16.msra.mxu0 %v1255
        %1595 = vmatprep.subr.bf16.mxu0 %v1247
        %1596 = vmatpush1.bf16.msra.mxu0 %v1246
        %1597 = vmatprep.subr.bf16.mxu0 %v1238
        %1598 = vmatpush1.bf16.msra.mxu0 %v1237
        %1599 = vmatprep.subr.bf16.mxu0 %v1229
        %1600 = vmatpush1.bf16.msra.mxu0 %v1228
        %1601 = vmatprep.subr.bf16.mxu0 %v1220
        %1602 = vmatpush1.bf16.msra.mxu0 %v1219
        %1603 = vmatprep.subr.bf16.mxu0 %v1211
        %1604 = vmatpush1.bf16.msra.mxu0 %v1210
        %1605 = vmatprep.subr.bf16.mxu0 %v1202
        %1606 = vmatpush1.bf16.msra.mxu0 %v1201
        %1607 = vmatprep.subr.bf16.mxu0 0
        %1608 = vmatpush2.bf16.msra.mxu0 0
        %1609 = vmatprep.subr.bf16.mxu0 0
        %1610 = vmatpush2.bf16.msra.mxu0 0
        %1611 = vmatprep.subr.bf16.mxu0 0
        %1612 = vmatpush2.bf16.msra.mxu0 0
        %1613 = vmatprep.subr.bf16.mxu0 0
        %1614 = vmatpush2.bf16.msra.mxu0 0
        %1615 = vmatprep.subr.bf16.mxu0 0
        %1616 = vmatpush2.bf16.msra.mxu0 0
        %1617 = vmatprep.subr.bf16.mxu0 0
        %1618 = vmatpush2.bf16.msra.mxu0 0
        %1619 = vmatprep.subr.bf16.mxu0 0
        %1620 = vmatpush2.bf16.msra.mxu0 0
        %1621 = vmatprep.subr.bf16.mxu0 0
        %1622 = vmatpush2.bf16.msra.mxu0 0
        %1623 = vmatprep.mubr.bf16.mxu0 0
        %1624 = vmatmul.mubr.bf16.gmra.mxu0 %v883
        %v1625 = vpop.f32.mrf.mxu0
        %v1626 = vpop.f32.mrf.mxu0
        %v1627 = vpop.f32.mrf.mxu0
        %v1628 = vpop.f32.mrf.mxu0
        %1629 = vmatprep.mubr.bf16.mxu0 0
        %1630 = vmatmul.mubr.bf16.gmra.mxu0 %v884
        %v1631 = vpop.f32.mrf.mxu0
        %v1632 = vadd.f32 0.0, %v1631
        %v1633 = vpop.f32.mrf.mxu0
        %v1634 = vadd.f32 0.0, %v1633
        %v1635 = vpop.f32.mrf.mxu0
        %v1636 = vadd.f32 0.0, %v1635
        %v1637 = vpop.f32.mrf.mxu0
        %v1638 = vadd.f32 0.0, %v1637
        %1639 = vmatprep.mubr.bf16.mxu0 0
        %1640 = vmatmul.mubr.bf16.gmra.mxu0 %v885
        %v1641 = vpop.f32.mrf.mxu0
        %v1642 = vadd.f32 0.0, %v1641
        %v1643 = vpop.f32.mrf.mxu0
        %v1644 = vadd.f32 0.0, %v1643
        %v1645 = vpop.f32.mrf.mxu0
        %v1646 = vadd.f32 0.0, %v1645
        %v1647 = vpop.f32.mrf.mxu0
        %v1648 = vadd.f32 0.0, %v1647
        %1649 = vmatprep.mubr.bf16.mxu0 0
        %1650 = vmatmul.mubr.bf16.gmra.mxu0 %v886
        %v1651 = vpop.f32.mrf.mxu0
        %v1652 = vadd.f32 0.0, %v1651
        %v1653 = vpop.f32.mrf.mxu0
        %v1654 = vadd.f32 0.0, %v1653
        %v1655 = vpop.f32.mrf.mxu0
        %v1656 = vadd.f32 0.0, %v1655
        %v1657 = vpop.f32.mrf.mxu0
        %v1658 = vadd.f32 0.0, %v1657
        %1659 = vmatprep.mubr.bf16.mxu0 0
        %1660 = vmatmul.mubr.bf16.gmra.mxu0 %v887
        %v1661 = vpop.f32.mrf.mxu0
        %v1662 = vadd.f32 0.0, %v1661
        %v1663 = vpop.f32.mrf.mxu0
        %v1664 = vadd.f32 0.0, %v1663
        %v1665 = vpop.f32.mrf.mxu0
        %v1666 = vadd.f32 0.0, %v1665
        %v1667 = vpop.f32.mrf.mxu0
        %v1668 = vadd.f32 0.0, %v1667
        %1669 = vmatprep.mubr.bf16.mxu0 0
        %1670 = vmatmul.mubr.bf16.gmra.mxu0 %v888
        %v1671 = vpop.f32.mrf.mxu0
        %v1672 = vadd.f32 0.0, %v1671
        %v1673 = vpop.f32.mrf.mxu0
        %v1674 = vadd.f32 0.0, %v1673
        %v1675 = vpop.f32.mrf.mxu0
        %v1676 = vadd.f32 0.0, %v1675
        %v1677 = vpop.f32.mrf.mxu0
        %v1678 = vadd.f32 0.0, %v1677
        %1679 = vmatprep.mubr.bf16.mxu0 0
        %1680 = vmatmul.mubr.bf16.gmra.mxu0 %v889
        %v1681 = vpop.f32.mrf.mxu0
        %v1682 = vadd.f32 0.0, %v1681
        %v1683 = vpop.f32.mrf.mxu0
        %v1684 = vadd.f32 0.0, %v1683
        %v1685 = vpop.f32.mrf.mxu0
        %v1686 = vadd.f32 0.0, %v1685
        %v1687 = vpop.f32.mrf.mxu0
        %v1688 = vadd.f32 0.0, %v1687
        %1689 = vmatprep.mubr.bf16.mxu0 0
        %1690 = vmatmul.mubr.bf16.gmra.mxu0 %v890
        %v1691 = vpop.f32.mrf.mxu0
        %v1692 = vadd.f32 0.0, %v1691
        %v1693 = vpop.f32.mrf.mxu0
        %v1694 = vadd.f32 0.0, %v1693
        %v1695 = vpop.f32.mrf.mxu0
        %v1696 = vadd.f32 0.0, %v1695
        %v1697 = vpop.f32.mrf.mxu0
        %v1698 = vadd.f32 0.0, %v1697
        %1699 = vmatprep.mubr.bf16.mxu0 0
        %1700 = vmatmul.mubr.bf16.gmra.mxu0 %v891
        %v1701 = vpop.f32.mrf.mxu0
        %v1702 = vadd.f32 0.0, %v1701
        %v1703 = vpop.f32.mrf.mxu0
        %v1704 = vadd.f32 0.0, %v1703
        %v1705 = vpop.f32.mrf.mxu0
        %v1706 = vadd.f32 0.0, %v1705
        %v1707 = vpop.f32.mrf.mxu0
        %v1708 = vadd.f32 0.0, %v1707
        %1709 = vmatprep.mubr.bf16.mxu0 0
        %1710 = vmatmul.mubr.bf16.gmra.mxu0 %v892
        %v1711 = vpop.f32.mrf.mxu0
        %v1712 = vpop.f32.mrf.mxu0
        %v1713 = vpop.f32.mrf.mxu0
        %v1714 = vpop.f32.mrf.mxu0
        %1715 = vdwg.mxu0
        %1716 = vmatprep.subr.bf16.mxu0 %v1267
        %1717 = vmatpush1.bf16.msra.mxu0 %v1266
        %1718 = vmatprep.subr.bf16.mxu0 %v1258
        %1719 = vmatpush1.bf16.msra.mxu0 %v1257
        %1720 = vmatprep.subr.bf16.mxu0 %v1249
        %1721 = vmatpush1.bf16.msra.mxu0 %v1248
        %1722 = vmatprep.subr.bf16.mxu0 %v1240
        %1723 = vmatpush1.bf16.msra.mxu0 %v1239
        %1724 = vmatprep.subr.bf16.mxu0 %v1231
        %1725 = vmatpush1.bf16.msra.mxu0 %v1230
        %1726 = vmatprep.subr.bf16.mxu0 %v1222
        %1727 = vmatpush1.bf16.msra.mxu0 %v1221
        %1728 = vmatprep.subr.bf16.mxu0 %v1213
        %1729 = vmatpush1.bf16.msra.mxu0 %v1212
        %1730 = vmatprep.subr.bf16.mxu0 %v1204
        %1731 = vmatpush1.bf16.msra.mxu0 %v1203
        %1732 = vmatprep.subr.bf16.mxu0 0
        %1733 = vmatpush2.bf16.msra.mxu0 0
        %1734 = vmatprep.subr.bf16.mxu0 0
        %1735 = vmatpush2.bf16.msra.mxu0 0
        %1736 = vmatprep.subr.bf16.mxu0 0
        %1737 = vmatpush2.bf16.msra.mxu0 0
        %1738 = vmatprep.subr.bf16.mxu0 0
        %1739 = vmatpush2.bf16.msra.mxu0 0
        %1740 = vmatprep.subr.bf16.mxu0 0
        %1741 = vmatpush2.bf16.msra.mxu0 0
        %1742 = vmatprep.subr.bf16.mxu0 0
        %1743 = vmatpush2.bf16.msra.mxu0 0
        %1744 = vmatprep.subr.bf16.mxu0 0
        %1745 = vmatpush2.bf16.msra.mxu0 0
        %1746 = vmatprep.subr.bf16.mxu0 0
        %1747 = vmatpush2.bf16.msra.mxu0 0
        %1748 = vmatprep.mubr.bf16.mxu0 0
        %1749 = vmatmul.mubr.bf16.gmra.mxu0 %v883
        %v1750 = vpop.f32.mrf.mxu0
        %v1751 = vpop.f32.mrf.mxu0
        %v1752 = vpop.f32.mrf.mxu0
        %v1753 = vpop.f32.mrf.mxu0
        %1754 = vmatprep.mubr.bf16.mxu0 0
        %1755 = vmatmul.mubr.bf16.gmra.mxu0 %v884
        %v1756 = vpop.f32.mrf.mxu0
        %v1757 = vpop.f32.mrf.mxu0
        %v1758 = vpop.f32.mrf.mxu0
        %v1759 = vpop.f32.mrf.mxu0
        %1760 = vmatprep.mubr.bf16.mxu0 0
        %1761 = vmatmul.mubr.bf16.gmra.mxu0 %v885
        %v1762 = vpop.f32.mrf.mxu0
        %v1763 = vadd.f32 0.0, %v1762
        %v1764 = vpop.f32.mrf.mxu0
        %v1765 = vadd.f32 0.0, %v1764
        %v1766 = vpop.f32.mrf.mxu0
        %v1767 = vadd.f32 0.0, %v1766
        %v1768 = vpop.f32.mrf.mxu0
        %v1769 = vadd.f32 0.0, %v1768
        %1770 = vmatprep.mubr.bf16.mxu0 0
        %1771 = vmatmul.mubr.bf16.gmra.mxu0 %v886
        %v1772 = vpop.f32.mrf.mxu0
        %v1773 = vadd.f32 0.0, %v1772
        %v1774 = vpop.f32.mrf.mxu0
        %v1775 = vadd.f32 0.0, %v1774
        %v1776 = vpop.f32.mrf.mxu0
        %v1777 = vadd.f32 0.0, %v1776
        %v1778 = vpop.f32.mrf.mxu0
        %v1779 = vadd.f32 0.0, %v1778
        %1780 = vmatprep.mubr.bf16.mxu0 0
        %1781 = vmatmul.mubr.bf16.gmra.mxu0 %v887
        %v1782 = vpop.f32.mrf.mxu0
        %v1783 = vadd.f32 0.0, %v1782
        %v1784 = vpop.f32.mrf.mxu0
        %v1785 = vadd.f32 0.0, %v1784
        %v1786 = vpop.f32.mrf.mxu0
        %v1787 = vadd.f32 0.0, %v1786
        %v1788 = vpop.f32.mrf.mxu0
        %v1789 = vadd.f32 0.0, %v1788
        %1790 = vmatprep.mubr.bf16.mxu0 0
        %1791 = vmatmul.mubr.bf16.gmra.mxu0 %v888
        %v1792 = vpop.f32.mrf.mxu0
        %v1793 = vadd.f32 0.0, %v1792
        %v1794 = vpop.f32.mrf.mxu0
        %v1795 = vadd.f32 0.0, %v1794
        %v1796 = vpop.f32.mrf.mxu0
        %v1797 = vadd.f32 0.0, %v1796
        %v1798 = vpop.f32.mrf.mxu0
        %v1799 = vadd.f32 0.0, %v1798
        %1800 = vmatprep.mubr.bf16.mxu0 0
        %1801 = vmatmul.mubr.bf16.gmra.mxu0 %v889
        %v1802 = vpop.f32.mrf.mxu0
        %v1803 = vadd.f32 0.0, %v1802
        %v1804 = vpop.f32.mrf.mxu0
        %v1805 = vadd.f32 0.0, %v1804
        %v1806 = vpop.f32.mrf.mxu0
        %v1807 = vadd.f32 0.0, %v1806
        %v1808 = vpop.f32.mrf.mxu0
        %v1809 = vadd.f32 0.0, %v1808
        %1810 = vmatprep.mubr.bf16.mxu0 0
        %1811 = vmatmul.mubr.bf16.gmra.mxu0 %v890
        %v1812 = vpop.f32.mrf.mxu0
        %v1813 = vadd.f32 0.0, %v1812
        %v1814 = vpop.f32.mrf.mxu0
        %v1815 = vadd.f32 0.0, %v1814
        %v1816 = vpop.f32.mrf.mxu0
        %v1817 = vadd.f32 0.0, %v1816
        %v1818 = vpop.f32.mrf.mxu0
        %v1819 = vadd.f32 0.0, %v1818
        %1820 = vmatprep.mubr.bf16.mxu0 0
        %1821 = vmatmul.mubr.bf16.gmra.mxu0 %v891
        %v1822 = vpop.f32.mrf.mxu0
        %v1823 = vadd.f32 0.0, %v1822
        %v1824 = vpop.f32.mrf.mxu0
        %v1825 = vadd.f32 0.0, %v1824
        %v1826 = vpop.f32.mrf.mxu0
        %v1827 = vadd.f32 0.0, %v1826
        %v1828 = vpop.f32.mrf.mxu0
        %v1829 = vadd.f32 0.0, %v1828
        %1830 = vmatprep.mubr.bf16.mxu0 0
        %1831 = vmatmul.mubr.bf16.gmra.mxu0 %v892
        %v1832 = vpop.f32.mrf.mxu0
        %v1833 = vadd.f32 0.0, %v1832
        %v1834 = vpop.f32.mrf.mxu0
        %v1835 = vadd.f32 0.0, %v1834
        %v1836 = vpop.f32.mrf.mxu0
        %v1837 = vadd.f32 0.0, %v1836
        %v1838 = vpop.f32.mrf.mxu0
        %v1839 = vadd.f32 0.0, %v1838
        %1840 = vdwg.mxu0
        %1841 = vmatprep.subr.bf16.mxu0 0
        %1842 = vmatpush1.bf16.msra.mxu0 %v1268
        %1843 = vmatprep.subr.bf16.mxu0 0
        %1844 = vmatpush1.bf16.msra.mxu0 %v1259
        %1845 = vmatprep.subr.bf16.mxu0 0
        %1846 = vmatpush1.bf16.msra.mxu0 %v1250
        %1847 = vmatprep.subr.bf16.mxu0 0
        %1848 = vmatpush1.bf16.msra.mxu0 %v1241
        %1849 = vmatprep.subr.bf16.mxu0 0
        %1850 = vmatpush1.bf16.msra.mxu0 %v1232
        %1851 = vmatprep.subr.bf16.mxu0 0
        %1852 = vmatpush1.bf16.msra.mxu0 %v1223
        %1853 = vmatprep.subr.bf16.mxu0 0
        %1854 = vmatpush1.bf16.msra.mxu0 %v1214
        %1855 = vmatprep.subr.bf16.mxu0 0
        %1856 = vmatpush1.bf16.msra.mxu0 %v1205
        %1857 = vmatprep.subr.bf16.mxu0 0
        %1858 = vmatpush2.bf16.msra.mxu0 0
        %1859 = vmatprep.subr.bf16.mxu0 0
        %1860 = vmatpush2.bf16.msra.mxu0 0
        %1861 = vmatprep.subr.bf16.mxu0 0
        %1862 = vmatpush2.bf16.msra.mxu0 0
        %1863 = vmatprep.subr.bf16.mxu0 0
        %1864 = vmatpush2.bf16.msra.mxu0 0
        %1865 = vmatprep.subr.bf16.mxu0 0
        %1866 = vmatpush2.bf16.msra.mxu0 0
        %1867 = vmatprep.subr.bf16.mxu0 0
        %1868 = vmatpush2.bf16.msra.mxu0 0
        %1869 = vmatprep.subr.bf16.mxu0 0
        %1870 = vmatpush2.bf16.msra.mxu0 0
        %1871 = vmatprep.subr.bf16.mxu0 0
        %1872 = vmatpush2.bf16.msra.mxu0 0
        %1873 = vmatprep.mubr.bf16.mxu0 0
        %1874 = vmatmul.mubr.bf16.gmra.mxu0 %v883
        %v1875 = vpop.f32.mrf.mxu0
        %v1876 = vpop.f32.mrf.mxu0
        %v1877 = vpop.f32.mrf.mxu0
        %v1878 = vpop.f32.mrf.mxu0
        %1879 = vmatprep.mubr.bf16.mxu0 0
        %1880 = vmatmul.mubr.bf16.gmra.mxu0 %v884
        %v1881 = vpop.f32.mrf.mxu0
        %v1882 = vpop.f32.mrf.mxu0
        %v1883 = vpop.f32.mrf.mxu0
        %v1884 = vpop.f32.mrf.mxu0
        %1885 = vmatprep.mubr.bf16.mxu0 0
        %1886 = vmatmul.mubr.bf16.gmra.mxu0 %v885
        %v1887 = vpop.f32.mrf.mxu0
        %v1888 = vadd.f32 0.0, %v1887
        %v1889 = vpop.f32.mrf.mxu0
        %v1890 = vpop.f32.mrf.mxu0
        %v1891 = vadd.f32 0.0, %v1890
        %v1892 = vpop.f32.mrf.mxu0
        %1893 = vmatprep.mubr.bf16.mxu0 0
        %1894 = vmatmul.mubr.bf16.gmra.mxu0 %v886
        %v1895 = vpop.f32.mrf.mxu0
        %v1896 = vadd.f32 0.0, %v1895
        %v1897 = vpop.f32.mrf.mxu0
        %v1898 = vpop.f32.mrf.mxu0
        %v1899 = vadd.f32 0.0, %v1898
        %v1900 = vpop.f32.mrf.mxu0
        %1901 = vmatprep.mubr.bf16.mxu0 0
        %1902 = vmatmul.mubr.bf16.gmra.mxu0 %v887
        %v1903 = vpop.f32.mrf.mxu0
        %v1904 = vadd.f32 0.0, %v1903
        %v1905 = vpop.f32.mrf.mxu0
        %v1906 = vpop.f32.mrf.mxu0
        %v1907 = vadd.f32 0.0, %v1906
        %v1908 = vpop.f32.mrf.mxu0
        %1909 = vmatprep.mubr.bf16.mxu0 0
        %1910 = vmatmul.mubr.bf16.gmra.mxu0 %v888
        %v1911 = vpop.f32.mrf.mxu0
        %v1912 = vadd.f32 0.0, %v1911
        %v1913 = vpop.f32.mrf.mxu0
        %v1914 = vpop.f32.mrf.mxu0
        %v1915 = vadd.f32 0.0, %v1914
        %v1916 = vpop.f32.mrf.mxu0
        %1917 = vmatprep.mubr.bf16.mxu0 0
        %1918 = vmatmul.mubr.bf16.gmra.mxu0 %v889
        %v1919 = vpop.f32.mrf.mxu0
        %v1920 = vadd.f32 0.0, %v1919
        %v1921 = vpop.f32.mrf.mxu0
        %v1922 = vpop.f32.mrf.mxu0
        %v1923 = vadd.f32 0.0, %v1922
        %v1924 = vpop.f32.mrf.mxu0
        %1925 = vmatprep.mubr.bf16.mxu0 0
        %1926 = vmatmul.mubr.bf16.gmra.mxu0 %v890
        %v1927 = vpop.f32.mrf.mxu0
        %v1928 = vadd.f32 0.0, %v1927
        %v1929 = vpop.f32.mrf.mxu0
        %v1930 = vpop.f32.mrf.mxu0
        %v1931 = vadd.f32 0.0, %v1930
        %v1932 = vpop.f32.mrf.mxu0
        %1933 = vmatprep.mubr.bf16.mxu0 0
        %1934 = vmatmul.mubr.bf16.gmra.mxu0 %v891
        %v1935 = vpop.f32.mrf.mxu0
        %v1936 = vadd.f32 0.0, %v1935
        %v1937 = vpop.f32.mrf.mxu0
        %v1938 = vpop.f32.mrf.mxu0
        %v1939 = vadd.f32 0.0, %v1938
        %v1940 = vpop.f32.mrf.mxu0
        %1941 = vmatprep.mubr.bf16.mxu0 0
        %1942 = vmatmul.mubr.bf16.gmra.mxu0 %v892
        %v1943 = vpop.f32.mrf.mxu0
        %v1944 = vadd.f32 0.0, %v1943
        %v1945 = vpop.f32.mrf.mxu0
        %v1946 = vpop.f32.mrf.mxu0
        %v1947 = vadd.f32 0.0, %v1946
        %v1948 = vpop.f32.mrf.mxu0
        %1949 = vdwg.mxu0
        %v1950 = vadd.f32 %v1376, %v1511
        %v1951 = vadd.f32 %v1380, %v1515
        %v1952 = vadd.f32 %v1386, %v1521
        %v1953 = vadd.f32 %v1390, %v1525
        %v1954 = vadd.f32 %v1396, %v1531
        %v1955 = vadd.f32 %v1400, %v1535
        %v1956 = vadd.f32 %v1406, %v1541
        %v1957 = vadd.f32 %v1410, %v1545
        %v1958 = vadd.f32 %v1416, %v1551
        %v1959 = vadd.f32 %v1420, %v1555
        %v1960 = vadd.f32 %v1426, %v1561
        %v1961 = vadd.f32 %v1430, %v1565
        %v1962 = vadd.f32 %v1436, %v1571
        %v1963 = vadd.f32 %v1440, %v1575
        %v1964 = vadd.f32 %v1446, %v1580
        %v1965 = vadd.f32 %v1450, %v1583
        %v1966 = vadd.f32 %v1950, %v1763
        %v1967 = vadd.f32 %v1951, %v1767
        %v1968 = vadd.f32 %v1952, %v1773
        %v1969 = vadd.f32 %v1953, %v1777
        %v1970 = vadd.f32 %v1954, %v1783
        %v1971 = vadd.f32 %v1955, %v1787
        %v1972 = vadd.f32 %v1956, %v1793
        %v1973 = vadd.f32 %v1957, %v1797
        %v1974 = vadd.f32 %v1958, %v1803
        %v1975 = vadd.f32 %v1959, %v1807
        %v1976 = vadd.f32 %v1960, %v1813
        %v1977 = vadd.f32 %v1961, %v1817
        %v1978 = vadd.f32 %v1962, %v1823
        %v1979 = vadd.f32 %v1963, %v1827
        %v1980 = vadd.f32 %v1964, %v1833
        %v1981 = vadd.f32 %v1965, %v1837
        %v1982 = vadd.f32 %v1378, %v1632
        %v1983 = vadd.f32 %v1382, %v1636
        %v1984 = vadd.f32 %v1388, %v1642
        %v1985 = vadd.f32 %v1392, %v1646
        %v1986 = vadd.f32 %v1398, %v1652
        %v1987 = vadd.f32 %v1402, %v1656
        %v1988 = vadd.f32 %v1408, %v1662
        %v1989 = vadd.f32 %v1412, %v1666
        %v1990 = vadd.f32 %v1418, %v1672
        %v1991 = vadd.f32 %v1422, %v1676
        %v1992 = vadd.f32 %v1428, %v1682
        %v1993 = vadd.f32 %v1432, %v1686
        %v1994 = vadd.f32 %v1438, %v1692
        %v1995 = vadd.f32 %v1442, %v1696
        %v1996 = vadd.f32 %v1448, %v1702
        %v1997 = vadd.f32 %v1452, %v1706
        %v1998 = vadd.f32 %v1982, %v1765
        %v1999 = vadd.f32 %v1983, %v1769
        %v2000 = vadd.f32 %v1984, %v1775
        %v2001 = vadd.f32 %v1985, %v1779
        %v2002 = vadd.f32 %v1986, %v1785
        %v2003 = vadd.f32 %v1987, %v1789
        %v2004 = vadd.f32 %v1988, %v1795
        %v2005 = vadd.f32 %v1989, %v1799
        %v2006 = vadd.f32 %v1990, %v1805
        %v2007 = vadd.f32 %v1991, %v1809
        %v2008 = vadd.f32 %v1992, %v1815
        %v2009 = vadd.f32 %v1993, %v1819
        %v2010 = vadd.f32 %v1994, %v1825
        %v2011 = vadd.f32 %v1995, %v1829
        %v2012 = vadd.f32 %v1996, %v1835
        %v2013 = vadd.f32 %v1997, %v1839
        %v2014 = vadd.f32 %v1501, %v1634
        %v2015 = vadd.f32 %v1504, %v1638
        %v2016 = vadd.f32 %v1509, %v1644
        %v2017 = vadd.f32 %v1513, %v1648
        %v2018 = vadd.f32 %v1519, %v1654
        %v2019 = vadd.f32 %v1523, %v1658
        %v2020 = vadd.f32 %v1529, %v1664
        %v2021 = vadd.f32 %v1533, %v1668
        %v2022 = vadd.f32 %v1539, %v1674
        %v2023 = vadd.f32 %v1543, %v1678
        %v2024 = vadd.f32 %v1549, %v1684
        %v2025 = vadd.f32 %v1553, %v1688
        %v2026 = vadd.f32 %v1559, %v1694
        %v2027 = vadd.f32 %v1563, %v1698
        %v2028 = vadd.f32 %v1569, %v1704
        %v2029 = vadd.f32 %v1573, %v1708
        %v2030 = vadd.f32 %v2014, %v1888
        %v2031 = vadd.f32 %v2015, %v1891
        %v2032 = vadd.f32 %v2016, %v1896
        %v2033 = vadd.f32 %v2017, %v1899
        %v2034 = vadd.f32 %v2018, %v1904
        %v2035 = vadd.f32 %v2019, %v1907
        %v2036 = vadd.f32 %v2020, %v1912
        %v2037 = vadd.f32 %v2021, %v1915
        %v2038 = vadd.f32 %v2022, %v1920
        %v2039 = vadd.f32 %v2023, %v1923
        %v2040 = vadd.f32 %v2024, %v1928
        %v2041 = vadd.f32 %v2025, %v1931
        %v2042 = vadd.f32 %v2026, %v1936
        %v2043 = vadd.f32 %v2027, %v1939
        %v2044 = vadd.f32 %v2028, %v1944
        %v2045 = vadd.f32 %v2029, %v1947
        %vm2046 = vcmp.lt.s32.totalorder %v695, 0
        %v2047 = vsub.s32 0, %v695
        %v2048 = vsel %vm2046, %v2047, %v695
        %v2049 = vshrl.u32 %v2048, 4
        %v2050 = vand.u32 %v2048, 15
        %v2051 = vsub.s32 0, %v2050
        %v2052 = vsel %vm2046, %v2051, %v2050
        %vm2053 = vcmp.lt.s32.totalorder %v696, 0
        %v2054 = vsub.s32 0, %v696
        %v2055 = vsel %vm2053, %v2054, %v696
        %v2056 = vshrl.u32 %v2055, 4
        %v2057 = vand.u32 %v2055, 15
        %v2058 = vsub.s32 0, %v2057
        %v2059 = vsel %vm2053, %v2058, %v2057
        %vm2060 = vcmp.lt.s32.totalorder %v697, 0
        %v2061 = vsub.s32 0, %v697
        %v2062 = vsel %vm2060, %v2061, %v697
        %v2063 = vshrl.u32 %v2062, 4
        %v2064 = vand.u32 %v2062, 15
        %v2065 = vsub.s32 0, %v2064
        %v2066 = vsel %vm2060, %v2065, %v2064
        %vm2067 = vcmp.lt.s32.totalorder %v698, 0
        %v2068 = vsub.s32 0, %v698
        %v2069 = vsel %vm2067, %v2068, %v698
        %v2070 = vshrl.u32 %v2069, 4
        %v2071 = vand.u32 %v2069, 15
        %v2072 = vsub.s32 0, %v2071
        %v2073 = vsel %vm2067, %v2072, %v2071
        %vm2074 = vcmp.lt.s32.totalorder %v699, 0
        %v2075 = vsub.s32 0, %v699
        %v2076 = vsel %vm2074, %v2075, %v699
        %v2077 = vshrl.u32 %v2076, 4
        %v2078 = vand.u32 %v2076, 15
        %v2079 = vsub.s32 0, %v2078
        %v2080 = vsel %vm2074, %v2079, %v2078
        %vm2081 = vcmp.lt.s32.totalorder %v700, 0
        %v2082 = vsub.s32 0, %v700
        %v2083 = vsel %vm2081, %v2082, %v700
        %v2084 = vshrl.u32 %v2083, 4
        %v2085 = vand.u32 %v2083, 15
        %v2086 = vsub.s32 0, %v2085
        %v2087 = vsel %vm2081, %v2086, %v2085
        %vm2088 = vcmp.lt.s32.totalorder %v701, 0
        %v2089 = vsub.s32 0, %v701
        %v2090 = vsel %vm2088, %v2089, %v701
        %v2091 = vshrl.u32 %v2090, 4
        %v2092 = vand.u32 %v2090, 15
        %v2093 = vsub.s32 0, %v2092
        %v2094 = vsel %vm2088, %v2093, %v2092
        %vm2095 = vcmp.lt.s32.totalorder %v702, 0
        %v2096 = vsub.s32 0, %v702
        %v2097 = vsel %vm2095, %v2096, %v702
        %v2098 = vshrl.u32 %v2097, 4
        %v2099 = vand.u32 %v2097, 15
        %v2100 = vsub.s32 0, %v2099
        %v2101 = vsel %vm2095, %v2100, %v2099
        %vm2102 = vcmp.lt.s32.totalorder %v703, 0
        %v2103 = vsub.s32 0, %v703
        %v2104 = vsel %vm2102, %v2103, %v703
        %v2105 = vshrl.u32 %v2104, 4
        %v2106 = vand.u32 %v2104, 15
        %v2107 = vsub.s32 0, %v2106
        %v2108 = vsel %vm2102, %v2107, %v2106
        %vm2109 = vcmp.lt.s32.totalorder %v704, 0
        %v2110 = vsub.s32 0, %v704
        %v2111 = vsel %vm2109, %v2110, %v704
        %v2112 = vshrl.u32 %v2111, 4
        %v2113 = vand.u32 %v2111, 15
        %v2114 = vsub.s32 0, %v2113
        %v2115 = vsel %vm2109, %v2114, %v2113
        %vm2116 = vcmp.lt.s32.totalorder %v705, 0
        %v2117 = vsub.s32 0, %v705
        %v2118 = vsel %vm2116, %v2117, %v705
        %v2119 = vshrl.u32 %v2118, 4
        %v2120 = vand.u32 %v2118, 15
        %v2121 = vsub.s32 0, %v2120
        %v2122 = vsel %vm2116, %v2121, %v2120
        %vm2123 = vcmp.lt.s32.totalorder %v706, 0
        %v2124 = vsub.s32 0, %v706
        %v2125 = vsel %vm2123, %v2124, %v706
        %v2126 = vshrl.u32 %v2125, 4
        %v2127 = vand.u32 %v2125, 15
        %v2128 = vsub.s32 0, %v2127
        %v2129 = vsel %vm2123, %v2128, %v2127
        %vm2130 = vcmp.lt.s32.totalorder %v707, 0
        %v2131 = vsub.s32 0, %v707
        %v2132 = vsel %vm2130, %v2131, %v707
        %v2133 = vshrl.u32 %v2132, 4
        %v2134 = vand.u32 %v2132, 15
        %v2135 = vsub.s32 0, %v2134
        %v2136 = vsel %vm2130, %v2135, %v2134
        %vm2137 = vcmp.lt.s32.totalorder %v708, 0
        %v2138 = vsub.s32 0, %v708
        %v2139 = vsel %vm2137, %v2138, %v708
        %v2140 = vshrl.u32 %v2139, 4
        %v2141 = vand.u32 %v2139, 15
        %v2142 = vsub.s32 0, %v2141
        %v2143 = vsel %vm2137, %v2142, %v2141
        %vm2144 = vcmp.lt.s32.totalorder %v709, 0
        %v2145 = vsub.s32 0, %v709
        %v2146 = vsel %vm2144, %v2145, %v709
        %v2147 = vshrl.u32 %v2146, 4
        %v2148 = vand.u32 %v2146, 15
        %v2149 = vsub.s32 0, %v2148
        %v2150 = vsel %vm2144, %v2149, %v2148
        %vm2151 = vcmp.lt.s32.totalorder %v710, 0
        %v2152 = vsub.s32 0, %v710
        %v2153 = vsel %vm2151, %v2152, %v710
        %v2154 = vshrl.u32 %v2153, 4
        %v2155 = vand.u32 %v2153, 15
        %v2156 = vsub.s32 0, %v2155
        %v2157 = vsel %vm2151, %v2156, %v2155
        %vm2158 = vcmp.ne.s32.totalorder %v2052, 0
        %vm2159 = vcmp.ne.s32.totalorder %v2059, 0
        %vm2160 = vcmp.ne.s32.totalorder %v2066, 0
        %vm2161 = vcmp.ne.s32.totalorder %v2073, 0
        %vm2162 = vcmp.ne.s32.totalorder %v2080, 0
        %vm2163 = vcmp.ne.s32.totalorder %v2087, 0
        %vm2164 = vcmp.ne.s32.totalorder %v2094, 0
        %vm2165 = vcmp.ne.s32.totalorder %v2101, 0
        %vm2166 = vcmp.ne.s32.totalorder %v2108, 0
        %vm2167 = vcmp.ne.s32.totalorder %v2115, 0
        %vm2168 = vcmp.ne.s32.totalorder %v2122, 0
        %vm2169 = vcmp.ne.s32.totalorder %v2129, 0
        %vm2170 = vcmp.ne.s32.totalorder %v2136, 0
        %vm2171 = vcmp.ne.s32.totalorder %v2143, 0
        %vm2172 = vcmp.ne.s32.totalorder %v2150, 0
        %vm2173 = vcmp.ne.s32.totalorder %v2157, 0
        %vm2174 = vcmp.lt.s32.totalorder %v2052, 0
        %vm2175 = vcmp.lt.s32.totalorder %v2059, 0
        %vm2176 = vcmp.lt.s32.totalorder %v2066, 0
        %vm2177 = vcmp.lt.s32.totalorder %v2073, 0
        %vm2178 = vcmp.lt.s32.totalorder %v2080, 0
        %vm2179 = vcmp.lt.s32.totalorder %v2087, 0
        %vm2180 = vcmp.lt.s32.totalorder %v2094, 0
        %vm2181 = vcmp.lt.s32.totalorder %v2101, 0
        %vm2182 = vcmp.lt.s32.totalorder %v2108, 0
        %vm2183 = vcmp.lt.s32.totalorder %v2115, 0
        %vm2184 = vcmp.lt.s32.totalorder %v2122, 0
        %vm2185 = vcmp.lt.s32.totalorder %v2129, 0
        %vm2186 = vcmp.lt.s32.totalorder %v2136, 0
        %vm2187 = vcmp.lt.s32.totalorder %v2143, 0
        %vm2188 = vcmp.lt.s32.totalorder %v2150, 0
        %vm2189 = vcmp.lt.s32.totalorder %v2157, 0
        %vm2190 = vmand %vm2174, %vm2158
        %vm2191 = vmand %vm2175, %vm2159
        %vm2192 = vmand %vm2176, %vm2160
        %vm2193 = vmand %vm2177, %vm2161
        %vm2194 = vmand %vm2178, %vm2162
        %vm2195 = vmand %vm2179, %vm2163
        %vm2196 = vmand %vm2180, %vm2164
        %vm2197 = vmand %vm2181, %vm2165
        %vm2198 = vmand %vm2182, %vm2166
        %vm2199 = vmand %vm2183, %vm2167
        %vm2200 = vmand %vm2184, %vm2168
        %vm2201 = vmand %vm2185, %vm2169
        %vm2202 = vmand %vm2186, %vm2170
        %vm2203 = vmand %vm2187, %vm2171
        %vm2204 = vmand %vm2188, %vm2172
        %vm2205 = vmand %vm2189, %vm2173
        %v2206 = vadd.s32 %v2052, 16
        %v2207 = vadd.s32 %v2059, 16
        %v2208 = vadd.s32 %v2066, 16
        %v2209 = vadd.s32 %v2073, 16
        %v2210 = vadd.s32 %v2080, 16
        %v2211 = vadd.s32 %v2087, 16
        %v2212 = vadd.s32 %v2094, 16
        %v2213 = vadd.s32 %v2101, 16
        %v2214 = vadd.s32 %v2108, 16
        %v2215 = vadd.s32 %v2115, 16
        %v2216 = vadd.s32 %v2122, 16
        %v2217 = vadd.s32 %v2129, 16
        %v2218 = vadd.s32 %v2136, 16
        %v2219 = vadd.s32 %v2143, 16
        %v2220 = vadd.s32 %v2150, 16
        %v2221 = vadd.s32 %v2157, 16
        %v2222 = vsel %vm2190, %v2206, %v2052
        %v2223 = vsel %vm2191, %v2207, %v2059
        %v2224 = vsel %vm2192, %v2208, %v2066
        %v2225 = vsel %vm2193, %v2209, %v2073
        %v2226 = vsel %vm2194, %v2210, %v2080
        %v2227 = vsel %vm2195, %v2211, %v2087
        %v2228 = vsel %vm2196, %v2212, %v2094
        %v2229 = vsel %vm2197, %v2213, %v2101
        %v2230 = vsel %vm2198, %v2214, %v2108
        %v2231 = vsel %vm2199, %v2215, %v2115
        %v2232 = vsel %vm2200, %v2216, %v2122
        %v2233 = vsel %vm2201, %v2217, %v2129
        %v2234 = vsel %vm2202, %v2218, %v2136
        %v2235 = vsel %vm2203, %v2219, %v2143
        %v2236 = vsel %vm2204, %v2220, %v2150
        %v2237 = vsel %vm2205, %v2221, %v2157
        %vm2238 = vcmp.gt.s32.totalorder %v2222, 0
        %vm2239 = vcmp.gt.s32.totalorder %v2223, 0
        %vm2240 = vcmp.gt.s32.totalorder %v2224, 0
        %vm2241 = vcmp.gt.s32.totalorder %v2225, 0
        %vm2242 = vcmp.gt.s32.totalorder %v2226, 0
        %vm2243 = vcmp.gt.s32.totalorder %v2227, 0
        %vm2244 = vcmp.gt.s32.totalorder %v2228, 0
        %vm2245 = vcmp.gt.s32.totalorder %v2229, 0
        %vm2246 = vcmp.gt.s32.totalorder %v2230, 0
        %vm2247 = vcmp.gt.s32.totalorder %v2231, 0
        %vm2248 = vcmp.gt.s32.totalorder %v2232, 0
        %vm2249 = vcmp.gt.s32.totalorder %v2233, 0
        %vm2250 = vcmp.gt.s32.totalorder %v2234, 0
        %vm2251 = vcmp.gt.s32.totalorder %v2235, 0
        %vm2252 = vcmp.gt.s32.totalorder %v2236, 0
        %vm2253 = vcmp.gt.s32.totalorder %v2237, 0
        %v2254 = vrot.slane %v1966, 7
        %v2255 = vrot.slane %v1967, 7
        %v2256 = vrot.slane %v1968, 7
        %v2257 = vrot.slane %v1969, 7
        %v2258 = vrot.slane %v1970, 7
        %v2259 = vrot.slane %v1971, 7
        %v2260 = vrot.slane %v1972, 7
        %v2261 = vrot.slane %v1973, 7
        %v2262 = vrot.slane %v1974, 7
        %v2263 = vrot.slane %v1975, 7
        %v2264 = vrot.slane %v1976, 7
        %v2265 = vrot.slane %v1977, 7
        %v2266 = vrot.slane %v1978, 7
        %v2267 = vrot.slane %v1979, 7
        %v2268 = vrot.slane %v1980, 7
        %v2269 = vrot.slane %v1981, 7
        %vm2270 = vcmp.lt.s32.totalorder %v695, 1
        %v2271 = vsel %vm2270, %v2268, %v2269
        %v2272 = vsel %vm2270, %v2267, %v2268
        %v2273 = vsel %vm2270, %v2266, %v2267
        %v2274 = vsel %vm2270, %v2265, %v2266
        %v2275 = vsel %vm2270, %v2264, %v2265
        %v2276 = vsel %vm2270, %v2263, %v2264
        %v2277 = vsel %vm2270, %v2262, %v2263
        %v2278 = vsel %vm2270, %v2261, %v2262
        %v2279 = vsel %vm2270, %v2260, %v2261
        %v2280 = vsel %vm2270, %v2259, %v2260
        %v2281 = vsel %vm2270, %v2258, %v2259
        %v2282 = vsel %vm2270, %v2257, %v2258
        %v2283 = vsel %vm2270, %v2256, %v2257
        %v2284 = vsel %vm2270, %v2255, %v2256
        %v2285 = vsel %vm2270, %v2254, %v2255
        %v2286 = vsel %vm2270, %v2269, %v2254
        %v2287 = vsel %vm2238, 1, 0
        %v2288 = vsel %vm2239, 1, 0
        %v2289 = vsel %vm2240, 1, 0
        %v2290 = vsel %vm2241, 1, 0
        %v2291 = vsel %vm2242, 1, 0
        %v2292 = vsel %vm2243, 1, 0
        %v2293 = vsel %vm2244, 1, 0
        %v2294 = vsel %vm2245, 1, 0
        %v2295 = vsel %vm2246, 1, 0
        %v2296 = vsel %vm2247, 1, 0
        %v2297 = vsel %vm2248, 1, 0
        %v2298 = vsel %vm2249, 1, 0
        %v2299 = vsel %vm2250, 1, 0
        %v2300 = vsel %vm2251, 1, 0
        %v2301 = vsel %vm2252, 1, 0
        %v2302 = vsel %vm2253, 1, 0
        %vm2303 = vcmp.eq.s32.totalorder %v2287, 1
        %vm2304 = vcmp.eq.s32.totalorder %v2288, 1
        %vm2305 = vcmp.eq.s32.totalorder %v2289, 1
        %vm2306 = vcmp.eq.s32.totalorder %v2290, 1
        %vm2307 = vcmp.eq.s32.totalorder %v2291, 1
        %vm2308 = vcmp.eq.s32.totalorder %v2292, 1
        %vm2309 = vcmp.eq.s32.totalorder %v2293, 1
        %vm2310 = vcmp.eq.s32.totalorder %v2294, 1
        %vm2311 = vcmp.eq.s32.totalorder %v2295, 1
        %vm2312 = vcmp.eq.s32.totalorder %v2296, 1
        %vm2313 = vcmp.eq.s32.totalorder %v2297, 1
        %vm2314 = vcmp.eq.s32.totalorder %v2298, 1
        %vm2315 = vcmp.eq.s32.totalorder %v2299, 1
        %vm2316 = vcmp.eq.s32.totalorder %v2300, 1
        %vm2317 = vcmp.eq.s32.totalorder %v2301, 1
        %vm2318 = vcmp.eq.s32.totalorder %v2302, 1
        %v2319 = vsel %vm2303, %v2286, 0.0
        %v2320 = vsel %vm2304, %v2285, 0.0
        %v2321 = vsel %vm2305, %v2284, 0.0
        %v2322 = vsel %vm2306, %v2283, 0.0
        %v2323 = vsel %vm2307, %v2282, 0.0
        %v2324 = vsel %vm2308, %v2281, 0.0
        %v2325 = vsel %vm2309, %v2280, 0.0
        %v2326 = vsel %vm2310, %v2279, 0.0
        %v2327 = vsel %vm2311, %v2278, 0.0
        %v2328 = vsel %vm2312, %v2277, 0.0
        %v2329 = vsel %vm2313, %v2276, 0.0
        %v2330 = vsel %vm2314, %v2275, 0.0
        %v2331 = vsel %vm2315, %v2274, 0.0
        %v2332 = vsel %vm2316, %v2273, 0.0
        %v2333 = vsel %vm2317, %v2272, 0.0
        %v2334 = vsel %vm2318, %v2271, 0.0
        %v2335 = vadd.f32 %v1998, %v2319
        %v2336 = vadd.f32 %v1999, %v2320
        %v2337 = vadd.f32 %v2000, %v2321
        %v2338 = vadd.f32 %v2001, %v2322
        %v2339 = vadd.f32 %v2002, %v2323
        %v2340 = vadd.f32 %v2003, %v2324
        %v2341 = vadd.f32 %v2004, %v2325
        %v2342 = vadd.f32 %v2005, %v2326
        %v2343 = vadd.f32 %v2006, %v2327
        %v2344 = vadd.f32 %v2007, %v2328
        %v2345 = vadd.f32 %v2008, %v2329
        %v2346 = vadd.f32 %v2009, %v2330
        %v2347 = vadd.f32 %v2010, %v2331
        %v2348 = vadd.f32 %v2011, %v2332
        %v2349 = vadd.f32 %v2012, %v2333
        %v2350 = vadd.f32 %v2013, %v2334
        %vm2351 = vcmp.lt.s32.totalorder %v2222, 15
        %vm2352 = vcmp.lt.s32.totalorder %v2223, 15
        %vm2353 = vcmp.lt.s32.totalorder %v2224, 15
        %vm2354 = vcmp.lt.s32.totalorder %v2225, 15
        %vm2355 = vcmp.lt.s32.totalorder %v2226, 15
        %vm2356 = vcmp.lt.s32.totalorder %v2227, 15
        %vm2357 = vcmp.lt.s32.totalorder %v2228, 15
        %vm2358 = vcmp.lt.s32.totalorder %v2229, 15
        %vm2359 = vcmp.lt.s32.totalorder %v2230, 15
        %vm2360 = vcmp.lt.s32.totalorder %v2231, 15
        %vm2361 = vcmp.lt.s32.totalorder %v2232, 15
        %vm2362 = vcmp.lt.s32.totalorder %v2233, 15
        %vm2363 = vcmp.lt.s32.totalorder %v2234, 15
        %vm2364 = vcmp.lt.s32.totalorder %v2235, 15
        %vm2365 = vcmp.lt.s32.totalorder %v2236, 15
        %vm2366 = vcmp.lt.s32.totalorder %v2237, 15
        %v2367 = vrot.slane %v2030, 1
        %v2368 = vrot.slane %v2031, 1
        %v2369 = vrot.slane %v2032, 1
        %v2370 = vrot.slane %v2033, 1
        %v2371 = vrot.slane %v2034, 1
        %v2372 = vrot.slane %v2035, 1
        %v2373 = vrot.slane %v2036, 1
        %v2374 = vrot.slane %v2037, 1
        %v2375 = vrot.slane %v2038, 1
        %v2376 = vrot.slane %v2039, 1
        %v2377 = vrot.slane %v2040, 1
        %v2378 = vrot.slane %v2041, 1
        %v2379 = vrot.slane %v2042, 1
        %v2380 = vrot.slane %v2043, 1
        %v2381 = vrot.slane %v2044, 1
        %v2382 = vrot.slane %v2045, 1
        %vm2383 = vcmp.lt.s32.totalorder %v695, 7
        %v2384 = vsel %vm2383, %v2381, %v2382
        %v2385 = vsel %vm2383, %v2380, %v2381
        %v2386 = vsel %vm2383, %v2379, %v2380
        %v2387 = vsel %vm2383, %v2378, %v2379
        %v2388 = vsel %vm2383, %v2377, %v2378
        %v2389 = vsel %vm2383, %v2376, %v2377
        %v2390 = vsel %vm2383, %v2375, %v2376
        %v2391 = vsel %vm2383, %v2374, %v2375
        %v2392 = vsel %vm2383, %v2373, %v2374
        %v2393 = vsel %vm2383, %v2372, %v2373
        %v2394 = vsel %vm2383, %v2371, %v2372
        %v2395 = vsel %vm2383, %v2370, %v2371
        %v2396 = vsel %vm2383, %v2369, %v2370
        %v2397 = vsel %vm2383, %v2368, %v2369
        %v2398 = vsel %vm2383, %v2367, %v2368
        %v2399 = vsel %vm2383, %v2382, %v2367
        %v2400 = vsel %vm2351, 1, 0
        %v2401 = vsel %vm2352, 1, 0
        %v2402 = vsel %vm2353, 1, 0
        %v2403 = vsel %vm2354, 1, 0
        %v2404 = vsel %vm2355, 1, 0
        %v2405 = vsel %vm2356, 1, 0
        %v2406 = vsel %vm2357, 1, 0
        %v2407 = vsel %vm2358, 1, 0
        %v2408 = vsel %vm2359, 1, 0
        %v2409 = vsel %vm2360, 1, 0
        %v2410 = vsel %vm2361, 1, 0
        %v2411 = vsel %vm2362, 1, 0
        %v2412 = vsel %vm2363, 1, 0
        %v2413 = vsel %vm2364, 1, 0
        %v2414 = vsel %vm2365, 1, 0
        %v2415 = vsel %vm2366, 1, 0
        %vm2416 = vcmp.eq.s32.totalorder %v2400, 1
        %vm2417 = vcmp.eq.s32.totalorder %v2401, 1
        %vm2418 = vcmp.eq.s32.totalorder %v2402, 1
        %vm2419 = vcmp.eq.s32.totalorder %v2403, 1
        %vm2420 = vcmp.eq.s32.totalorder %v2404, 1
        %vm2421 = vcmp.eq.s32.totalorder %v2405, 1
        %vm2422 = vcmp.eq.s32.totalorder %v2406, 1
        %vm2423 = vcmp.eq.s32.totalorder %v2407, 1
        %vm2424 = vcmp.eq.s32.totalorder %v2408, 1
        %vm2425 = vcmp.eq.s32.totalorder %v2409, 1
        %vm2426 = vcmp.eq.s32.totalorder %v2410, 1
        %vm2427 = vcmp.eq.s32.totalorder %v2411, 1
        %vm2428 = vcmp.eq.s32.totalorder %v2412, 1
        %vm2429 = vcmp.eq.s32.totalorder %v2413, 1
        %vm2430 = vcmp.eq.s32.totalorder %v2414, 1
        %vm2431 = vcmp.eq.s32.totalorder %v2415, 1
        %v2432 = vsel %vm2416, %v2398, 0.0
        %v2433 = vsel %vm2417, %v2397, 0.0
        %v2434 = vsel %vm2418, %v2396, 0.0
        %v2435 = vsel %vm2419, %v2395, 0.0
        %v2436 = vsel %vm2420, %v2394, 0.0
        %v2437 = vsel %vm2421, %v2393, 0.0
        %v2438 = vsel %vm2422, %v2392, 0.0
        %v2439 = vsel %vm2423, %v2391, 0.0
        %v2440 = vsel %vm2424, %v2390, 0.0
        %v2441 = vsel %vm2425, %v2389, 0.0
        %v2442 = vsel %vm2426, %v2388, 0.0
        %v2443 = vsel %vm2427, %v2387, 0.0
        %v2444 = vsel %vm2428, %v2386, 0.0
        %v2445 = vsel %vm2429, %v2385, 0.0
        %v2446 = vsel %vm2430, %v2384, 0.0
        %v2447 = vsel %vm2431, %v2399, 0.0
        %v2448 = vadd.f32 %v2335, %v2432
        %v2449 = vadd.f32 %v2336, %v2433
        %v2450 = vadd.f32 %v2337, %v2434
        %v2451 = vadd.f32 %v2338, %v2435
        %v2452 = vadd.f32 %v2339, %v2436
        %v2453 = vadd.f32 %v2340, %v2437
        %v2454 = vadd.f32 %v2341, %v2438
        %v2455 = vadd.f32 %v2342, %v2439
        %v2456 = vadd.f32 %v2343, %v2440
        %v2457 = vadd.f32 %v2344, %v2441
        %v2458 = vadd.f32 %v2345, %v2442
        %v2459 = vadd.f32 %v2346, %v2443
        %v2460 = vadd.f32 %v2347, %v2444
        %v2461 = vadd.f32 %v2348, %v2445
        %v2462 = vadd.f32 %v2349, %v2446
        %v2463 = vadd.f32 %v2350, %v2447
        %v2464 = vld [vmem:[%s6] sm:$0x1]
        %v2466 = vlaneseq
        %v2467 = vshrl.u32 %v2466, 7
        %v2468 = vsub.s32 0, %v2467
        %v2469 = vrot.slane %v2464, %v2468
        %v2471 = vadd.f32 %v2448, %v2469
        %v2472 = vadd.f32 %v2449, %v2469
        %v2473 = vadd.f32 %v2450, %v2469
        %v2474 = vadd.f32 %v2451, %v2469
        %v2475 = vadd.f32 %v2452, %v2469
        %v2476 = vadd.f32 %v2453, %v2469
        %v2477 = vadd.f32 %v2454, %v2469
        %v2478 = vadd.f32 %v2455, %v2469
        %v2479 = vadd.f32 %v2456, %v2469
        %v2480 = vadd.f32 %v2457, %v2469
        %v2481 = vadd.f32 %v2458, %v2469
        %v2482 = vadd.f32 %v2459, %v2469
        %v2483 = vadd.f32 %v2460, %v2469
        %v2484 = vadd.f32 %v2461, %v2469
        %v2485 = vadd.f32 %v2462, %v2469
        %v2486 = vadd.f32 %v2463, %v2469
        %v2487 = vmax.f32 %v2471, 0.0
        %v2488 = vmax.f32 %v2472, 0.0
        %v2489 = vmax.f32 %v2473, 0.0
        %v2490 = vmax.f32 %v2474, 0.0
        %v2491 = vmax.f32 %v2475, 0.0
        %v2492 = vmax.f32 %v2476, 0.0
        %v2493 = vmax.f32 %v2477, 0.0
        %v2494 = vmax.f32 %v2478, 0.0
        %v2495 = vmax.f32 %v2479, 0.0
        %v2496 = vmax.f32 %v2480, 0.0
        %v2497 = vmax.f32 %v2481, 0.0
        %v2498 = vmax.f32 %v2482, 0.0
        %v2499 = vmax.f32 %v2483, 0.0
        %v2500 = vmax.f32 %v2484, 0.0
        %v2501 = vmax.f32 %v2485, 0.0
        %v2502 = vmax.f32 %v2486, 0.0
        %v2503 = vpack.c.bf16 %v2488, %v2487
        %v2504 = vpack.c.bf16 %v2490, %v2489
        %v2505 = vpack.c.bf16 %v2492, %v2491
        %v2506 = vpack.c.bf16 %v2494, %v2493
        %v2507 = vpack.c.bf16 %v2496, %v2495
        %v2508 = vpack.c.bf16 %v2498, %v2497
        %v2509 = vpack.c.bf16 %v2500, %v2499
        %v2510 = vpack.c.bf16 %v2502, %v2501
        %s2511 = sadd.s32 %s384, 16
        %s2512 = scalar_lea.vmem %s337, %s2511 [#allocation2]
        %v2513 = vld [vmem:[%s2512] sm:$0xff]
        %v2514 = vld [vmem:[%s2512 + $0x8] sm:$0xff]
        %v2515 = vld [vmem:[%s2512 + $0x10] sm:$0xff]
        %v2516 = vld [vmem:[%s2512 + $0x18] sm:$0xff]
        %v2517 = vld [vmem:[%s2512 + $0x20] sm:$0xff]
        %v2518 = vld [vmem:[%s2512 + $0x28] sm:$0xff]
        %v2519 = vld [vmem:[%s2512 + $0x30] sm:$0xff]
        %v2520 = vld [vmem:[%s2512 + $0x38] sm:$0xff]
        %v2521 = vld [vmem:[%s2512 + $0x40] sm:$0xff]
        %v2522 = vld [vmem:[%s2512 + $0x48] sm:$0xff]
        %v2523 = vld [vmem:[%s2512 + $0x50] sm:$0xff]
        %v2524 = vld [vmem:[%s2512 + $0x58] sm:$0xff]
        %v2525 = vld [vmem:[%s2512 + $0x60] sm:$0xff]
        %v2526 = vld [vmem:[%s2512 + $0x68] sm:$0xff]
        %v2527 = vld [vmem:[%s2512 + $0x70] sm:$0xff]
        %v2528 = vld [vmem:[%s2512 + $0x78] sm:$0xff]
        %v2529 = vld [vmem:[#allocation8] sm:$0xf]
        %v2530 = vld [vmem:[#allocation8 + $0x4] sm:$0xf]
        %v2531 = vld [vmem:[#allocation8 + $0x8] sm:$0xf]
        %v2532 = vld [vmem:[#allocation8 + $0xc] sm:$0xf]
        %v2533 = vld [vmem:[#allocation8 + $0x10] sm:$0xf]
        %v2534 = vld [vmem:[#allocation8 + $0x14] sm:$0xf]
        %v2535 = vld [vmem:[#allocation8 + $0x18] sm:$0xf]
        %v2536 = vld [vmem:[#allocation8 + $0x1c] sm:$0xf]
        %v2537 = vld [vmem:[#allocation8 + $0x20] sm:$0xf]
        %v2538 = vld [vmem:[#allocation8 + $0x24] sm:$0xf]
        %v2539 = vld [vmem:[#allocation8 + $0x28] sm:$0xf]
        %v2540 = vld [vmem:[#allocation8 + $0x2c] sm:$0xf]
        %v2541 = vld [vmem:[#allocation8 + $0x30] sm:$0xf]
        %v2542 = vld [vmem:[#allocation8 + $0x34] sm:$0xf]
        %v2543 = vld [vmem:[#allocation8 + $0x38] sm:$0xf]
        %v2544 = vld [vmem:[#allocation8 + $0x3c] sm:$0xf]
        %v2561 = vunpack.c.l.b16 %v2529
        %v2562 = vunpack.c.l.b16 %v2530
        %v2563 = vunpack.c.l.b16 %v2531
        %v2564 = vunpack.c.l.b16 %v2532
        %v2565 = vunpack.c.l.b16 %v2533
        %v2566 = vunpack.c.l.b16 %v2534
        %v2567 = vunpack.c.l.b16 %v2535
        %v2568 = vunpack.c.l.b16 %v2536
        %v2569 = vunpack.c.l.b16 %v2537
        %v2570 = vunpack.c.l.b16 %v2538
        %v2571 = vunpack.c.l.b16 %v2539
        %v2572 = vunpack.c.l.b16 %v2540
        %v2573 = vunpack.c.l.b16 %v2541
        %v2574 = vunpack.c.l.b16 %v2542
        %v2575 = vunpack.c.l.b16 %v2543
        %v2576 = vunpack.c.l.b16 %v2544
        %v2577 = vpack.c.b16 %v2562, %v2561
        %v2578 = vpack.c.b16 %v2564, %v2563
        %v2579 = vpack.c.b16 %v2566, %v2565
        %v2580 = vpack.c.b16 %v2568, %v2567
        %v2581 = vpack.c.b16 %v2570, %v2569
        %v2582 = vpack.c.b16 %v2572, %v2571
        %v2583 = vpack.c.b16 %v2574, %v2573
        %v2584 = vpack.c.b16 %v2576, %v2575
        %2593 = vmatprep.subr.bf16.mxu0 0
        %2594 = vmatpush1.bf16.msra.mxu0 %v2584
        %2595 = vmatprep.subr.bf16.mxu0 0
        %2596 = vmatpush1.bf16.msra.mxu0 %v2583
        %2597 = vmatprep.subr.bf16.mxu0 0
        %2598 = vmatpush1.bf16.msra.mxu0 %v2582
        %2599 = vmatprep.subr.bf16.mxu0 0
        %2600 = vmatpush1.bf16.msra.mxu0 %v2581
        %2601 = vmatprep.subr.bf16.mxu0 0
        %2602 = vmatpush1.bf16.msra.mxu0 %v2580
        %2603 = vmatprep.subr.bf16.mxu0 0
        %2604 = vmatpush1.bf16.msra.mxu0 %v2579
        %2605 = vmatprep.subr.bf16.mxu0 0
        %2606 = vmatpush1.bf16.msra.mxu0 %v2578
        %2607 = vmatprep.subr.bf16.mxu0 0
        %2608 = vmatpush1.bf16.msra.mxu0 %v2577
        %2609 = vmatprep.subr.bf16.mxu0 0
        %2610 = vmatpush2.bf16.msra.mxu0 0
        %2611 = vmatprep.subr.bf16.mxu0 0
        %2612 = vmatpush2.bf16.msra.mxu0 0
        %2613 = vmatprep.subr.bf16.mxu0 0
        %2614 = vmatpush2.bf16.msra.mxu0 0
        %2615 = vmatprep.subr.bf16.mxu0 0
        %2616 = vmatpush2.bf16.msra.mxu0 0
        %2617 = vmatprep.subr.bf16.mxu0 0
        %2618 = vmatpush2.bf16.msra.mxu0 0
        %2619 = vmatprep.subr.bf16.mxu0 0
        %2620 = vmatpush2.bf16.msra.mxu0 0
        %2621 = vmatprep.subr.bf16.mxu0 0
        %2622 = vmatpush2.bf16.msra.mxu0 0
        %2623 = vmatprep.subr.bf16.mxu0 0
        %2624 = vmatpush2.bf16.msra.mxu0 0
        %2625 = vmatprep.mubr.bf16.mxu0 0
        %2626 = vmatmul.mubr.bf16.gmra.mxu0 %v2503
        %v2627 = vpop.f32.mrf.mxu0
        %v2628 = vadd.f32 %v2513, %v2627
        %v2629 = vpop.f32.mrf.mxu0
        %v2630 = vpop.f32.mrf.mxu0
        %v2631 = vadd.f32 %v2514, %v2630
        %v2632 = vpop.f32.mrf.mxu0
        %2633 = vmatprep.mubr.bf16.mxu0 0
        %2634 = vmatmul.mubr.bf16.gmra.mxu0 %v2504
        %v2635 = vpop.f32.mrf.mxu0
        %v2636 = vadd.f32 %v2515, %v2635
        %v2637 = vpop.f32.mrf.mxu0
        %v2638 = vpop.f32.mrf.mxu0
        %v2639 = vadd.f32 %v2516, %v2638
        %v2640 = vpop.f32.mrf.mxu0
        %2641 = vmatprep.mubr.bf16.mxu0 0
        %2642 = vmatmul.mubr.bf16.gmra.mxu0 %v2505
        %v2643 = vpop.f32.mrf.mxu0
        %v2644 = vadd.f32 %v2517, %v2643
        %v2645 = vpop.f32.mrf.mxu0
        %v2646 = vpop.f32.mrf.mxu0
        %v2647 = vadd.f32 %v2518, %v2646
        %v2648 = vpop.f32.mrf.mxu0
        %2649 = vmatprep.mubr.bf16.mxu0 0
        %2650 = vmatmul.mubr.bf16.gmra.mxu0 %v2506
        %v2651 = vpop.f32.mrf.mxu0
        %v2652 = vadd.f32 %v2519, %v2651
        %v2653 = vpop.f32.mrf.mxu0
        %v2654 = vpop.f32.mrf.mxu0
        %v2655 = vadd.f32 %v2520, %v2654
        %v2656 = vpop.f32.mrf.mxu0
        %2657 = vmatprep.mubr.bf16.mxu0 0
        %2658 = vmatmul.mubr.bf16.gmra.mxu0 %v2507
        %v2659 = vpop.f32.mrf.mxu0
        %v2660 = vadd.f32 %v2521, %v2659
        %v2661 = vpop.f32.mrf.mxu0
        %v2662 = vpop.f32.mrf.mxu0
        %v2663 = vadd.f32 %v2522, %v2662
        %v2664 = vpop.f32.mrf.mxu0
        %2665 = vmatprep.mubr.bf16.mxu0 0
        %2666 = vmatmul.mubr.bf16.gmra.mxu0 %v2508
        %v2667 = vpop.f32.mrf.mxu0
        %v2668 = vadd.f32 %v2523, %v2667
        %v2669 = vpop.f32.mrf.mxu0
        %v2670 = vpop.f32.mrf.mxu0
        %v2671 = vadd.f32 %v2524, %v2670
        %v2672 = vpop.f32.mrf.mxu0
        %2673 = vmatprep.mubr.bf16.mxu0 0
        %2674 = vmatmul.mubr.bf16.gmra.mxu0 %v2509
        %v2675 = vpop.f32.mrf.mxu0
        %v2676 = vadd.f32 %v2525, %v2675
        %v2677 = vpop.f32.mrf.mxu0
        %v2678 = vpop.f32.mrf.mxu0
        %v2679 = vadd.f32 %v2526, %v2678
        %v2680 = vpop.f32.mrf.mxu0
        %2681 = vmatprep.mubr.bf16.mxu0 0
        %2682 = vmatmul.mubr.bf16.gmra.mxu0 %v2510
        %v2683 = vpop.f32.mrf.mxu0
        %v2684 = vadd.f32 %v2527, %v2683
        %v2685 = vpop.f32.mrf.mxu0
        %v2686 = vpop.f32.mrf.mxu0
        %v2687 = vadd.f32 %v2528, %v2686
        %v2688 = vpop.f32.mrf.mxu0
        %2689 = vdwg.mxu0
        %2690 = vst [vmem:[%s381] sm:$0xff] %v2628
        %2691 = vst [vmem:[%s381 + $0x8] sm:$0xff] %v2631
        %2692 = vst [vmem:[%s381 + $0x10] sm:$0xff] %v2636
        %2693 = vst [vmem:[%s381 + $0x18] sm:$0xff] %v2639
        %2694 = vst [vmem:[%s381 + $0x20] sm:$0xff] %v2644
        %2695 = vst [vmem:[%s381 + $0x28] sm:$0xff] %v2647
        %2696 = vst [vmem:[%s381 + $0x30] sm:$0xff] %v2652
        %2697 = vst [vmem:[%s381 + $0x38] sm:$0xff] %v2655
        %2698 = vst [vmem:[%s381 + $0x40] sm:$0xff] %v2660
        %2699 = vst [vmem:[%s381 + $0x48] sm:$0xff] %v2663
        %2700 = vst [vmem:[%s381 + $0x50] sm:$0xff] %v2668
        %2701 = vst [vmem:[%s381 + $0x58] sm:$0xff] %v2671
        %2702 = vst [vmem:[%s381 + $0x60] sm:$0xff] %v2676
        %2703 = vst [vmem:[%s381 + $0x68] sm:$0xff] %v2679
        %2704 = vst [vmem:[%s381 + $0x70] sm:$0xff] %v2684
        %2705 = vst [vmem:[%s381 + $0x78] sm:$0xff] %v2687
        %s2706 = sand.u32 %s222, 1
        %s2707 = scalar_lea.sflag [#allocation4], %s2706
        %s2708 = sand.u32 %s222, 1
        %s2709 = smul.addr %s2708, 128
        %s2710 = scalar_lea.vmem [#allocation10], %s2709
        // Predicated region
        $region69: #{tpu_custom_call.1} parent=51 // pred_check
          %p2711 = pneg %p232
        $region70: #{tpu_custom_call.1} parent=51 // pred_check_branch
          %2713 = sbr.rel (%p2711) target = $region72
        $region71: #{tpu_custom_call.1} parent=51 // pred_region
          %s2714 = smul.u32 16, %s32
          %s2716 = ssub.s32 2048, 2048
          %2717 = vsyncadd %s2707, %s2716
          %s2718 = smul.addr %s31, 32
          %s2719 = sadd.s32 %s2714, %s2718
          %s2720 = smul.addr %s2719, 128
          %s2721 = scalar_lea.hbm %s8, %s2720
          %s2722 = sshll.u32 %s2710, 4
          %s2723 = int_to_ptr.vmem [resolvable:$true] %s2722
          %2728 = dma.vmem_to_hbm [thread:$0]  %s2723, 2048, %s2721, %s2707, 128, 128, 8
        $region72: #{tpu_custom_call.1} parent=51 // pred_fallthru
          _
      $region52: #{tpu_custom_call.1} parent=5 // pred_fallthru
        _
      %p2729 = scmp.le.s32.totalorder 2, %s22
      // Predicated region
      $region73: #{tpu_custom_call.1} parent=5 // pred_check
        %p2730 = pneg %p2729
      $region74: #{tpu_custom_call.1} parent=5 // pred_check_branch
        %2732 = sbr.rel (%p2730) target = $region76
      $region75: #{tpu_custom_call.1} parent=5 // pred_region
        %s2733 = ssub.s32 %s22, 2
        // Predicated region
        $region77: #{tpu_custom_call.1} parent=75 // pred_check
          %p2734 = pneg %p238
        $region78: #{tpu_custom_call.1} parent=75 // pred_check_branch
          %2736 = sbr.rel (%p2734) target = $region80
        $region79: #{tpu_custom_call.1} parent=75 // pred_region
          %s2737 = sand.u32 %s223, 1
          %s2738 = scalar_lea.sflag [#allocation4], %s2737
          %s2739 = sand.u32 %s223, 1
          %s2740 = smul.addr %s2739, 128
          %s2741 = scalar_lea.vmem [#allocation10], %s2740
          %2742 = dma.done %s2738, 2048
        $region80: #{tpu_custom_call.1} parent=75 // pred_fallthru
          _
      $region76: #{tpu_custom_call.1} parent=5 // pred_fallthru
        _
    $region6: #{tpu_custom_call.1} parent=1 // loop_footer
      %s26 = sadd.s32 1, %s22
    $region7: #{tpu_custom_call.1} parent=1 // loop_footer_branch
      %21 = sbr.rel target = $region3
    $region8: #{tpu_custom_call.1} parent=1 // loop_exit
      _
    %2743 = vsyncpa [#allocation3], 1
    %s2744 = scalar_lea.sflag [#allocation3], 1
    %2745 = vsyncpa %s2744, 1
    %2746 = vsyncpa [#allocation6], 1
    %2747 = vsyncpa [#allocation9], 1
    %2748 = vsyncpa [#allocation4], 1
    %s2749 = scalar_lea.sflag [#allocation4], 1
    %2750 = vsyncpa %s2749, 1

</llo_original>
